<compile_context>
chip_gen: v5e
topology: v5e:2x2
jax: 0.10.0
libtpu: 0.0.40
codegen_flags: <defaults>
</compile_context>

<pallas_src>
import jax
import jax.numpy as jnp
from jax import lax
from jax.experimental import pallas as pl
from jax.experimental.pallas import tpu as pltpu


F_PAD = 128            # trend head padded to one full lane tile


def _round_up(n, m):
    return ((n + m - 1) // m) * m


def _make_kernel(P):
    """P = lane-aligned pooled-feature width (static)."""

    def kernel(x_ref, wc_ref, w2_ref, b_ref, out_ref):
        # x_ref  : (TB, T)            bf16 raw history block
        # wc_ref : (T, 2P + F_PAD)    bf16 [conv1-even | conv1-odd | trend]
        # w2_ref : (P + F_PAD, OW)    bf16 [[Toeplitz conv2, 0], [I_trend, 0]]
        # b_ref  : (1, OW)            f32  output bias (conv1 bias folded in)
        # out_ref: (TB, OW)           f32  [conv2 flat | trend | pad]
        h = jnp.dot(x_ref[...], wc_ref[...], preferred_element_type=jnp.float32)
        # MaxPool1d(2): elementwise max of even/odd conv1 positions (f32, VPU).
        p = jnp.maximum(h[:, 0:P], h[:, P:2 * P])                   # (TB, P)
        # Append the (lane-aligned) trend slab and do one bf16 matmul that
        # emits the whole lane-dense output row (conv2 features + trend).
        p_ext = jnp.concatenate([p, h[:, 2 * P:]], axis=-1).astype(jnp.bfloat16)
        out_ref[...] = (
            jnp.dot(p_ext, w2_ref[...], preferred_element_type=jnp.float32)
            + b_ref[...])

    return kernel


def prepare_params(params, T):
    """Build the block-Toeplitz weights consumed by the kernel.  Call ONCE
    (hoisted out of the per-call path); results can be cached / donated.
    All folds are done in f32; only the final matmul operands are cast bf16."""
    w1, b1, w2, b2, wt, bt = params
    C1, _, K = w1.shape                # (32, 1, 3)
    C2 = w2.shape[0]                   # 64
    F, T_TR = wt.shape                 # (32, 24)
    assert T >= T_TR and T >= K + 3, "history too short for conv stack / trend"
    assert F <= F_PAD
    L1 = T - (K - 1)                   # conv1 output length
    Lp = L1 // 2                       # after MaxPool1d(2)
    L2 = Lp - (K - 1)                  # conv2 output length
    P = _round_up(Lp * C1, 128)        # lane-aligned pooled feature width
    cw = L2 * C2                       # flattened conv2 feature width
    n_feat = cw + F                    # valid output width
    out_w = _round_up(n_feat, 128)     # lane-dense padded output width

    w1k = jnp.asarray(w1[:, 0, :].T, jnp.float32)                    # (K, C1)

    def conv1_weight(parity):
        # W[t, m*C1 + c] = w1[c, 0, t - (2m + parity)]  (valid taps only)
        k_of = jnp.arange(T)[:, None] - (2 * jnp.arange(Lp) + parity)[None, :]
        valid = (k_of >= 0) & (k_of < K)                             # (T, Lp)
        w = jnp.where(valid[:, :, None], w1k[jnp.clip(k_of, 0, K - 1)], 0.0)
        return jnp.pad(w.reshape(T, Lp * C1), ((0, 0), (0, P - Lp * C1)))

    # Trend weight aligned to the last T_TR timesteps of x, padded to F_PAD.
    wt_big = jnp.zeros((T, F_PAD), jnp.float32)
    wt_big = wt_big.at[T - T_TR:, :F].set(jnp.asarray(wt, jnp.float32).T)

    w_comb = jnp.concatenate([conv1_weight(0), conv1_weight(1), wt_big], axis=1)

    # conv2 block-Toeplitz (f32): W2b[m*C1 + c, l*C2 + o] = w2[o, c, m - l]
    w2k = jnp.transpose(jnp.asarray(w2, jnp.float32), (2, 1, 0))     # (K, C1, C2)
    k_of2 = jnp.arange(Lp)[:, None] - jnp.arange(L2)[None, :]        # (Lp, L2)
    valid2 = (k_of2 >= 0) & (k_of2 < K)
    w2b = w2k[jnp.clip(k_of2, 0, K - 1)]                             # (Lp, L2, C1, C2)
    w2b = jnp.where(valid2[:, :, None, None], w2b, 0.0)
    w2b = jnp.transpose(w2b, (0, 2, 1, 3)).reshape(Lp * C1, L2 * C2)
    w2b = jnp.pad(w2b, ((0, P - Lp * C1), (0, 0)))                   # (P, cw)

    # Biases (f32 fold): max(a,b)+b1 == max(a+b1,b+b1), so fold b1 through w2b.
    b1_flat = jnp.pad(jnp.tile(jnp.asarray(b1, jnp.float32), Lp), (0, P - Lp * C1))
    b_conv = b1_flat @ w2b + jnp.tile(jnp.asarray(b2, jnp.float32), L2)
    b_all = jnp.zeros((1, out_w), jnp.float32)
    b_all = b_all.at[0, :cw].set(b_conv)
    b_all = b_all.at[0, cw:n_feat].set(jnp.asarray(bt, jnp.float32))

    # Extended second weight: conv2 Toeplitz block + identity passthrough for
    # the trend features, so a single matmul emits the full 896-wide output.
    w2_ext = jnp.zeros((P + F_PAD, out_w), jnp.float32)
    w2_ext = w2_ext.at[:P, :cw].set(w2b)
    w2_ext = w2_ext.at[P:P + F, cw:n_feat].set(jnp.eye(F, dtype=jnp.float32))

    meta = dict(P=P, n_feat=n_feat)
    return (w_comb.astype(jnp.bfloat16), w2_ext.astype(jnp.bfloat16), b_all, meta)


def _pick_tb(B):
    """Batch tile.  Large batches: ~1024-row tiles (fits all gens' VMEM, incl.
    v7x's 64 MiB, and keeps >=2 grid steps for its 2 TensorCores).  Small
    batches: one tile rounded to the bf16 sublane tile (16).  The wrapper pads
    B up to a multiple of TB, so no divisibility requirement on B."""
    if B <= 1024:
        return _round_up(max(B, 1), 16)
    n_blocks = -(-B // 1024)
    return _round_up(-(-B // n_blocks), 16)


def _const_spec(shape):
    """BlockSpec for a grid-invariant operand; single-buffered when supported."""
    index_map = lambda i: (0, 0)
    try:
        return pl.BlockSpec(shape, index_map, pipeline_mode=pl.Buffered(1))
    except TypeError:
        return pl.BlockSpec(shape, index_map)


def temporal_feature_extractor(x, prepped):
    """x: (B, T) float32.  Returns (B, L2*64 + 32) f32 features (conv flat | trend)."""
    w_comb, w2_ext, b_all, meta = prepped
    P, n_feat = meta["P"], meta["n_feat"]
    B, T = x.shape
    out_w = b_all.shape[1]

    TB = _pick_tb(B)
    grid = -(-B // TB)
    B_pad = grid * TB

    xb = x.astype(jnp.bfloat16)
    if B_pad != B:
        xb = jnp.pad(xb, ((0, B_pad - B), (0, 0)))

    out = pl.pallas_call(
        _make_kernel(P),
        out_shape=jax.ShapeDtypeStruct((B_pad, out_w), jnp.float32),
        grid_spec=pltpu.PrefetchScalarGridSpec(
            num_scalar_prefetch=0,
            grid=(grid,),
            in_specs=[
                pl.BlockSpec((TB, T), lambda i: (i, 0)),
                _const_spec(w_comb.shape),
                _const_spec(w2_ext.shape),
                _const_spec(b_all.shape),
            ],
            out_specs=pl.BlockSpec((TB, out_w), lambda i: (i, 0)),
        ),
        compiler_params=pltpu.CompilerParams(
            dimension_semantics=("parallel",),
            vmem_limit_bytes=48 * 1024 * 1024),
    )(xb, w_comb, w2_ext, b_all)

    # Drop batch padding and the lane-alignment columns.
    return out[:B, :n_feat]


def reference(x, params):
    """Pure-JAX f32 reference matching the intended PyTorch semantics (NCW convs)."""
    w1, b1, w2, b2, wt, bt = params
    dn = ("NCH", "OIH", "NCH")
    xc = x[:, None, :]                                               # (B, 1, T)
    y1 = lax.conv_general_dilated(xc, w1, (1,), "VALID",
                                  dimension_numbers=dn) + b1[None, :, None]
    B, C, L = y1.shape
    pool = jnp.max(y1[:, :, :(L // 2) * 2].reshape(B, C, L // 2, 2), axis=-1)
    y2 = lax.conv_general_dilated(pool, w2, (1,), "VALID",
                                  dimension_numbers=dn) + b2[None, :, None]
    trend = x[:, -24:] @ wt.T + bt
    return y2, trend                                                 # (B,64,13),(B,32)


if __name__ == "__main__":
    key = jax.random.PRNGKey(0)
    k_x, k1, k2, k3, k4, k5, k6 = jax.random.split(key, 7)

    B, T = 2, 32                       # small shapes: batch=2, history length=32
    x = jax.random.normal(k_x, (B, T), dtype=jnp.float32)

    # Module __init__ shapes: Conv1d(1,32,3), MaxPool1d(2), Conv1d(32,64,3), Linear(24,32)
    w1 = 0.1 * jax.random.normal(k1, (32, 1, 3), dtype=jnp.float32)
    b1 = 0.1 * jax.random.normal(k2, (32,), dtype=jnp.float32)
    w2 = 0.1 * jax.random.normal(k3, (64, 32, 3), dtype=jnp.float32)
    b2 = 0.1 * jax.random.normal(k4, (64,), dtype=jnp.float32)
    wt = 0.1 * jax.random.normal(k5, (32, 24), dtype=jnp.float32)
    bt = 0.1 * jax.random.normal(k6, (32,), dtype=jnp.float32)
    params = (w1, b1, w2, b2, wt, bt)

    w_comb, w2_ext, b_all, meta = prepare_params(params, T)          # once, offline
    w_comb = jax.block_until_ready(w_comb)
    w2_ext = jax.block_until_ready(w2_ext)
    b_all = jax.block_until_ready(b_all)
    prepped = (w_comb, w2_ext, b_all, meta)

    out = temporal_feature_extractor(x, prepped)
    out = jax.block_until_ready(out)

    # Sanity check against a pure-JAX f32 reference (bf16 matmul tolerance).
    ref_stats, ref_trend = reference(x, params)                   # (B,64,13), (B,32)
    C2, L2 = ref_stats.shape[1], ref_stats.shape[2]
    ref_flat = jnp.transpose(ref_stats, (0, 2, 1)).reshape(B, L2 * C2)
    ok_conv = jnp.allclose(out[:, :L2 * C2], ref_flat, rtol=2e-2, atol=2e-2)
    ok_trend = jnp.allclose(out[:, L2 * C2:], ref_trend, rtol=2e-2, atol=2e-2)
    ok_shape = out.shape == (B, 64 * 13 + 32)
    if not (bool(ok_conv) and bool(ok_trend) and ok_shape):
        raise AssertionError("Pallas kernel mismatch vs reference")

    print("KERNEL_OK")
</pallas_src>

<mosaic_0001>
module attributes {stable_mosaic.version = 11 : i64} {
  func.func @kernel(%arg0: i32, %arg1: memref<16x32xbf16, #tpu.memory_space<vmem>>, %arg2: memref<32x1152xbf16, #tpu.memory_space<vmem>>, %arg3: memref<640x896xbf16, #tpu.memory_space<vmem>>, %arg4: memref<1x896xf32, #tpu.memory_space<vmem>>, %arg5: memref<16x896xf32, #tpu.memory_space<vmem>>) attributes {dimension_semantics = [#tpu.dimension_semantics<parallel>], iteration_bounds = array<i64: 1>, scalar_prefetch = 0 : i64, scratch_operands = 0 : i64, tpu.core_type = #tpu.core_type<tc>, window_params = [{transform_indices = @transform_0, window_bounds = array<i64: 16, 32>}, {pipeline_mode = #tpu.pipeline_mode<synchronous>, transform_indices = @transform_1, window_bounds = array<i64: 32, 1152>}, {pipeline_mode = #tpu.pipeline_mode<synchronous>, transform_indices = @transform_2, window_bounds = array<i64: 640, 896>}, {pipeline_mode = #tpu.pipeline_mode<synchronous>, transform_indices = @transform_3, window_bounds = array<i64: 1, 896>}, {transform_indices = @transform_4, window_bounds = array<i64: 16, 896>}]} {
    %c0 = arith.constant 0 : index
    %c0_0 = arith.constant 0 : index
    %0 = vector.load %arg1[%c0, %c0_0] : memref<16x32xbf16, #tpu.memory_space<vmem>>, vector<16x32xbf16>
    %c0_1 = arith.constant 0 : index
    %c0_2 = arith.constant 0 : index
    %1 = vector.load %arg2[%c0_1, %c0_2] : memref<32x1152xbf16, #tpu.memory_space<vmem>>, vector<32x1152xbf16>
    %cst = arith.constant dense<0.000000e+00> : vector<16x1152xf32>
    %2 = tpu.matmul %0, %1, %cst {dimension_numbers = #tpu.dot_dimension_numbers<[1], [0], [0], [1], [0, 0, 1, 1], [], []>} : vector<16x32xbf16>, vector<32x1152xbf16>, vector<16x1152xf32> -> vector<16x1152xf32>
    %3 = vector.extract_strided_slice %2 {offsets = [0, 0], sizes = [16, 512], strides = [1, 1]} : vector<16x1152xf32> to vector<16x512xf32>
    %4 = vector.extract_strided_slice %2 {offsets = [0, 512], sizes = [16, 512], strides = [1, 1]} : vector<16x1152xf32> to vector<16x512xf32>
    %5 = arith.maximumf %3, %4 : vector<16x512xf32>
    %6 = vector.extract_strided_slice %2 {offsets = [0, 1024], sizes = [16, 128], strides = [1, 1]} : vector<16x1152xf32> to vector<16x128xf32>
    %7 = tpu.concatenate %5, %6 in 1 : vector<16x512xf32>, vector<16x128xf32> -> vector<16x640xf32>
    %8 = arith.truncf %7 : vector<16x640xf32> to vector<16x640xbf16>
    %c0_3 = arith.constant 0 : index
    %c0_4 = arith.constant 0 : index
    %9 = vector.load %arg3[%c0_3, %c0_4] : memref<640x896xbf16, #tpu.memory_space<vmem>>, vector<640x896xbf16>
    %cst_5 = arith.constant dense<0.000000e+00> : vector<16x896xf32>
    %10 = tpu.matmul %8, %9, %cst_5 {dimension_numbers = #tpu.dot_dimension_numbers<[1], [0], [0], [1], [0, 0, 1, 1], [], []>} : vector<16x640xbf16>, vector<640x896xbf16>, vector<16x896xf32> -> vector<16x896xf32>
    %c0_6 = arith.constant 0 : index
    %c0_7 = arith.constant 0 : index
    %11 = vector.load %arg4[%c0_6, %c0_7] : memref<1x896xf32, #tpu.memory_space<vmem>>, vector<1x896xf32>
    %12 = vector.broadcast %11 : vector<1x896xf32> to vector<16x896xf32>
    %13 = arith.addf %10, %12 : vector<16x896xf32>
    %c0_8 = arith.constant 0 : index
    %c0_9 = arith.constant 0 : index
    %14 = vector.load %arg5[%c0_8, %c0_9] : memref<16x896xf32, #tpu.memory_space<vmem>>, vector<16x896xf32>
    tpu.vector_store %arg5[%c0_8, %c0_9], %13 {strides = array<i32>} : memref<16x896xf32, #tpu.memory_space<vmem>>, vector<16x896xf32>,
    return
  }
  func.func @transform_0(%arg0: i32) -> (i32, i32) {
    %c0_i32 = arith.constant 0 : i32
    %c0_i32_0 = arith.constant 0 : i32
    return %arg0, %c0_i32 : i32, i32
  }
  func.func @transform_1(%arg0: i32) -> (i32, i32) {
    %c0_i32 = arith.constant 0 : i32
    %c0_i32_0 = arith.constant 0 : i32
    %c0_i32_1 = arith.constant 0 : i32
    return %c0_i32, %c0_i32_0 : i32, i32
  }
  func.func @transform_2(%arg0: i32) -> (i32, i32) {
    %c0_i32 = arith.constant 0 : i32
    %c0_i32_0 = arith.constant 0 : i32
    %c0_i32_1 = arith.constant 0 : i32
    return %c0_i32, %c0_i32_0 : i32, i32
  }
  func.func @transform_3(%arg0: i32) -> (i32, i32) {
    %c0_i32 = arith.constant 0 : i32
    %c0_i32_0 = arith.constant 0 : i32
    %c0_i32_1 = arith.constant 0 : i32
    return %c0_i32, %c0_i32_0 : i32, i32
  }
  func.func @transform_4(%arg0: i32) -> (i32, i32) {
    %c0_i32 = arith.constant 0 : i32
    %c0_i32_0 = arith.constant 0 : i32
    return %arg0, %c0_i32 : i32, i32
  }
}

</mosaic_0001>

<llo_original>
// kernel: tpu_custom_call.1
$region0: #{tpu_custom_call.1}
  #allocation0 [shape = 'u32[]', space=smem, size = 0x4, offset = 0x4, fixed_abs, tag = 'smem constant byte address 0x4 - core index']
  #allocation1 [shape = 'u32[72,128]{1,0:T(1,128)}', space=vmem, size = 0x9000, scoped, tag = 'internal scratch']
  %s0 = inlined_call_operand.hbm [shape: bf16[16,32], index: 0, kind: input, shape index: {}]
  %s1 = inlined_call_operand.hbm [shape: bf16[32,1152], index: 1, kind: input, shape index: {}]
  %s2 = inlined_call_operand.hbm [shape: bf16[640,896], index: 2, kind: input, shape index: {}]
  %s3 = inlined_call_operand.hbm [shape: f32[1,896], index: 3, kind: input, shape index: {}]
  %s4 = inlined_call_operand.hbm [shape: f32[16,896], index: 4, kind: output, shape index: {}]
  %s5 = sld [smem:[#allocation0]]
  $region42: #{tpu_custom_call.1} parent=0
    _
  %s7 = ssub.s32 1, %s5
  %s8 = scalar_select 0, %s7, %s5
  $region1: #{tpu_custom_call.1} parent=0
    #allocation2 [shape = 'u8[4096]{0}', space=vmem, size = 0x1000, scoped, tag = 'input window, operand 0, single buffered']
    #allocation3 [shape = 's32[1]{0}', space=sflag, size = 0x4, scoped, tag = 'scoped memory for tpu_custom_call.1']
    #allocation4 [shape = 's32[1]{0}', space=sflag, size = 0x4, scoped, tag = 'scoped memory for tpu_custom_call.1']
    #allocation5 [shape = 'u8[73728]{0}', space=vmem, size = 0x12000, scoped, tag = 'input window, operand 1, single buffered']
    #allocation6 [shape = 's32[1]{0}', space=sflag, size = 0x4, scoped, tag = 'scoped memory for tpu_custom_call.1']
    #allocation7 [shape = 'u8[1146880]{0}', space=vmem, size = 0x118000, scoped, tag = 'input window, operand 2, single buffered']
    #allocation8 [shape = 'u8[3584]{0}', space=vmem, size = 0x1000, scoped, tag = 'input window, operand 3, single buffered']
    #allocation9 [shape = 's32[1]{0}', space=sflag, size = 0x4, scoped, tag = 'scoped memory for tpu_custom_call.1']
    #allocation10 [shape = 'u8[57344]{0}', space=vmem, size = 0xe000, scoped, tag = 'output window, operand 0, single buffered']
    %9 = vsyncpa [#allocation3], 0
    %10 = vsyncpa [#allocation6], 0
    %11 = vsyncpa [#allocation9], 0
    %12 = vsyncpa [#allocation4], 0
    // Predicated region
    $region2: #{tpu_custom_call.1} parent=1 // pred_check
      _
    $region3: #{tpu_custom_call.1} parent=1 // pred_check_branch
      %14 = sbr.rel (0) target = $region5
    $region4: #{tpu_custom_call.1} parent=1 // pred_region
      %16 = vsyncadd [#allocation3], 0
      %s17 = sshll.u32 %s0, 4
      %s18 = int_to_ptr.hbm [resolvable:$true] %s17
      %s19 = sshll.u32 [#allocation2], 4
      %s20 = int_to_ptr.vmem [resolvable:$true] %s19
      %25 = dma.hbm_to_vmem [thread:$0]  %s18, 128, %s20, [#allocation3], 64, 64, 4
    $region5: #{tpu_custom_call.1} parent=1 // pred_fallthru
      _
    // Predicated region
    $region6: #{tpu_custom_call.1} parent=1 // pred_check
      _
    $region7: #{tpu_custom_call.1} parent=1 // pred_check_branch
      %27 = sbr.rel (0) target = $region9
    $region8: #{tpu_custom_call.1} parent=1 // pred_region
      %29 = vsyncadd [#allocation6], 0
      %s30 = sshll.u32 %s1, 4
      %s31 = int_to_ptr.hbm [resolvable:$true] %s30
      %s32 = sshll.u32 [#allocation5], 4
      %s33 = int_to_ptr.vmem [resolvable:$true] %s32
      %38 = dma.hbm_to_vmem [thread:$0]  %s31, 2304, %s33, [#allocation6], 576, 576, 36
    $region9: #{tpu_custom_call.1} parent=1 // pred_fallthru
      _
    // Predicated region
    $region10: #{tpu_custom_call.1} parent=1 // pred_check
      _
    $region11: #{tpu_custom_call.1} parent=1 // pred_check_branch
      %40 = sbr.rel (0) target = $region13
    $region12: #{tpu_custom_call.1} parent=1 // pred_region
      %42 = vsyncadd [#allocation6], 0
      %s43 = sshll.u32 %s2, 4
      %s44 = int_to_ptr.hbm [resolvable:$true] %s43
      %s45 = sshll.u32 [#allocation7], 4
      %s46 = int_to_ptr.vmem [resolvable:$true] %s45
      %51 = dma.hbm_to_vmem [thread:$0]  %s44, 35840, %s46, [#allocation6], 448, 448, 28
    $region13: #{tpu_custom_call.1} parent=1 // pred_fallthru
      _
    // Predicated region
    $region14: #{tpu_custom_call.1} parent=1 // pred_check
      _
    $region15: #{tpu_custom_call.1} parent=1 // pred_check_branch
      %53 = sbr.rel (0) target = $region17
    $region16: #{tpu_custom_call.1} parent=1 // pred_region
      %55 = vsyncadd [#allocation9], 0
      %s57 = sshll.u32 %s3, 4
      %s58 = int_to_ptr.hbm [resolvable:$true] %s57
      %s59 = sshll.u32 [#allocation8], 4
      %s60 = int_to_ptr.vmem [resolvable:$true] %s59
      %62 = dma.hbm_to_vmem [thread:$0]  %s58, 112, %s60, [#allocation9]
    $region17: #{tpu_custom_call.1} parent=1 // pred_fallthru
      _
    // Predicated region
    $region18: #{tpu_custom_call.1} parent=1 // pred_check
      _
    $region19: #{tpu_custom_call.1} parent=1 // pred_check_branch
      %64 = sbr.rel (0) target = $region21
    $region20: #{tpu_custom_call.1} parent=1 // pred_region
      %66 = dma.done [#allocation3], 128
    $region21: #{tpu_custom_call.1} parent=1 // pred_fallthru
      _
    // Predicated region
    $region22: #{tpu_custom_call.1} parent=1 // pred_check
      _
    $region23: #{tpu_custom_call.1} parent=1 // pred_check_branch
      %68 = sbr.rel (0) target = $region25
    $region24: #{tpu_custom_call.1} parent=1 // pred_region
      %70 = dma.done [#allocation6], 2304
    $region25: #{tpu_custom_call.1} parent=1 // pred_fallthru
      _
    // Predicated region
    $region26: #{tpu_custom_call.1} parent=1 // pred_check
      _
    $region27: #{tpu_custom_call.1} parent=1 // pred_check_branch
      %72 = sbr.rel (0) target = $region29
    $region28: #{tpu_custom_call.1} parent=1 // pred_region
      %74 = dma.done [#allocation6], 35840
    $region29: #{tpu_custom_call.1} parent=1 // pred_fallthru
      _
    // Predicated region
    $region30: #{tpu_custom_call.1} parent=1 // pred_check
      _
    $region31: #{tpu_custom_call.1} parent=1 // pred_check_branch
      %76 = sbr.rel (0) target = $region33
    $region32: #{tpu_custom_call.1} parent=1 // pred_region
      %78 = dma.done [#allocation9], 112
    $region33: #{tpu_custom_call.1} parent=1 // pred_fallthru
      _
    %v80 = vld [vmem:[#allocation2] sm:$0xf]
    %v81 = vld [vmem:[#allocation2 + $0x4] sm:$0xf]
    %v82 = vld [vmem:[#allocation5] sm:$0xff]
    %v83 = vld [vmem:[#allocation5 + $0x8] sm:$0xff]
    %v84 = vld [vmem:[#allocation5 + $0x10] sm:$0xff]
    %v85 = vld [vmem:[#allocation5 + $0x18] sm:$0xff]
    %v86 = vld [vmem:[#allocation5 + $0x20] sm:$0xf]
    %v87 = vld [vmem:[#allocation5 + $0x24] sm:$0xff]
    %v88 = vld [vmem:[#allocation5 + $0x2c] sm:$0xff]
    %v89 = vld [vmem:[#allocation5 + $0x34] sm:$0xff]
    %v90 = vld [vmem:[#allocation5 + $0x3c] sm:$0xff]
    %v91 = vld [vmem:[#allocation5 + $0x44] sm:$0xf]
    %v92 = vld [vmem:[#allocation5 + $0x48] sm:$0xff]
    %v93 = vld [vmem:[#allocation5 + $0x50] sm:$0xff]
    %v94 = vld [vmem:[#allocation5 + $0x58] sm:$0xff]
    %v95 = vld [vmem:[#allocation5 + $0x60] sm:$0xff]
    %v96 = vld [vmem:[#allocation5 + $0x68] sm:$0xf]
    %v97 = vld [vmem:[#allocation5 + $0x6c] sm:$0xff]
    %v98 = vld [vmem:[#allocation5 + $0x74] sm:$0xff]
    %v99 = vld [vmem:[#allocation5 + $0x7c] sm:$0xff]
    %v100 = vld [vmem:[#allocation5 + $0x84] sm:$0xff]
    %v101 = vld [vmem:[#allocation5 + $0x8c] sm:$0xf]
    %v104 = vunpack.c.l.b16 %v80
    %v105 = vunpack.c.l.b16 %v81
    %v106 = vpack.c.b16 %v105, %v104
    %v127 = vunpack.c.l.b16 %v82
    %v128 = vunpack.c.h.b16 %v82
    %v129 = vunpack.c.l.b16 %v83
    %v130 = vunpack.c.h.b16 %v83
    %v131 = vunpack.c.l.b16 %v84
    %v132 = vunpack.c.h.b16 %v84
    %v133 = vunpack.c.l.b16 %v85
    %v134 = vunpack.c.h.b16 %v85
    %v135 = vunpack.c.l.b16 %v86
    %v136 = vunpack.c.l.b16 %v87
    %v137 = vunpack.c.h.b16 %v87
    %v138 = vunpack.c.l.b16 %v88
    %v139 = vunpack.c.h.b16 %v88
    %v140 = vunpack.c.l.b16 %v89
    %v141 = vunpack.c.h.b16 %v89
    %v142 = vunpack.c.l.b16 %v90
    %v143 = vunpack.c.h.b16 %v90
    %v144 = vunpack.c.l.b16 %v91
    %v145 = vunpack.c.l.b16 %v92
    %v146 = vunpack.c.h.b16 %v92
    %v147 = vunpack.c.l.b16 %v93
    %v148 = vunpack.c.h.b16 %v93
    %v149 = vunpack.c.l.b16 %v94
    %v150 = vunpack.c.h.b16 %v94
    %v151 = vunpack.c.l.b16 %v95
    %v152 = vunpack.c.h.b16 %v95
    %v153 = vunpack.c.l.b16 %v96
    %v154 = vunpack.c.l.b16 %v97
    %v155 = vunpack.c.h.b16 %v97
    %v156 = vunpack.c.l.b16 %v98
    %v157 = vunpack.c.h.b16 %v98
    %v158 = vunpack.c.l.b16 %v99
    %v159 = vunpack.c.h.b16 %v99
    %v160 = vunpack.c.l.b16 %v100
    %v161 = vunpack.c.h.b16 %v100
    %v162 = vunpack.c.l.b16 %v101
    %v163 = vpack.c.b16 %v136, %v127
    %v164 = vpack.c.b16 %v137, %v128
    %v165 = vpack.c.b16 %v138, %v129
    %v166 = vpack.c.b16 %v139, %v130
    %v167 = vpack.c.b16 %v140, %v131
    %v168 = vpack.c.b16 %v141, %v132
    %v169 = vpack.c.b16 %v142, %v133
    %v170 = vpack.c.b16 %v143, %v134
    %v171 = vpack.c.b16 %v144, %v135
    %v172 = vpack.c.b16 %v154, %v145
    %v173 = vpack.c.b16 %v155, %v146
    %v174 = vpack.c.b16 %v156, %v147
    %v175 = vpack.c.b16 %v157, %v148
    %v176 = vpack.c.b16 %v158, %v149
    %v177 = vpack.c.b16 %v159, %v150
    %v178 = vpack.c.b16 %v160, %v151
    %v179 = vpack.c.b16 %v161, %v152
    %v180 = vpack.c.b16 %v162, %v153
    %vm199 = vcmask 261120
    %v201 = vsel %vm199, %v106, 0
    %203 = vmatpush.bf16.msra.mxu0 0
    %204 = vmatpush.bf16.msra.mxu0 0
    %205 = vmatpush.bf16.msra.mxu0 0
    %206 = vmatpush.bf16.msra.mxu0 0
    %207 = vmatpush.bf16.msra.mxu0 0
    %208 = vmatpush.bf16.msra.mxu0 0
    %209 = vmatpush.bf16.msra.mxu0 %v172
    %210 = vmatpush.bf16.msra.mxu0 %v163
    %211 = vmatmul.bf16.gmra.mxu0 %v201
    %v212 = vpop.f32.mrf.mxu0
    %v213 = vadd.f32 0.0, %v212
    %v214 = vpop.f32.mrf.mxu0
    %v215 = vadd.f32 0.0, %v214
    %216 = vdwg.mxu0
    %217 = vmatpush.bf16.msra.mxu0 0
    %218 = vmatpush.bf16.msra.mxu0 0
    %219 = vmatpush.bf16.msra.mxu0 0
    %220 = vmatpush.bf16.msra.mxu0 0
    %221 = vmatpush.bf16.msra.mxu0 0
    %222 = vmatpush.bf16.msra.mxu0 0
    %223 = vmatpush.bf16.msra.mxu0 %v173
    %224 = vmatpush.bf16.msra.mxu0 %v164
    %225 = vmatmul.bf16.gmra.mxu0 %v201
    %v226 = vpop.f32.mrf.mxu0
    %v227 = vadd.f32 0.0, %v226
    %v228 = vpop.f32.mrf.mxu0
    %v229 = vadd.f32 0.0, %v228
    %230 = vdwg.mxu0
    %231 = vmatpush.bf16.msra.mxu0 0
    %232 = vmatpush.bf16.msra.mxu0 0
    %233 = vmatpush.bf16.msra.mxu0 0
    %234 = vmatpush.bf16.msra.mxu0 0
    %235 = vmatpush.bf16.msra.mxu0 0
    %236 = vmatpush.bf16.msra.mxu0 0
    %237 = vmatpush.bf16.msra.mxu0 %v174
    %238 = vmatpush.bf16.msra.mxu0 %v165
    %239 = vmatmul.bf16.gmra.mxu0 %v201
    %v240 = vpop.f32.mrf.mxu0
    %v241 = vadd.f32 0.0, %v240
    %v242 = vpop.f32.mrf.mxu0
    %v243 = vadd.f32 0.0, %v242
    %244 = vdwg.mxu0
    %245 = vmatpush.bf16.msra.mxu0 0
    %246 = vmatpush.bf16.msra.mxu0 0
    %247 = vmatpush.bf16.msra.mxu0 0
    %248 = vmatpush.bf16.msra.mxu0 0
    %249 = vmatpush.bf16.msra.mxu0 0
    %250 = vmatpush.bf16.msra.mxu0 0
    %251 = vmatpush.bf16.msra.mxu0 %v175
    %252 = vmatpush.bf16.msra.mxu0 %v166
    %253 = vmatmul.bf16.gmra.mxu0 %v201
    %v254 = vpop.f32.mrf.mxu0
    %v255 = vadd.f32 0.0, %v254
    %v256 = vpop.f32.mrf.mxu0
    %v257 = vadd.f32 0.0, %v256
    %258 = vdwg.mxu0
    %259 = vmatpush.bf16.msra.mxu0 0
    %260 = vmatpush.bf16.msra.mxu0 0
    %261 = vmatpush.bf16.msra.mxu0 0
    %262 = vmatpush.bf16.msra.mxu0 0
    %263 = vmatpush.bf16.msra.mxu0 0
    %264 = vmatpush.bf16.msra.mxu0 0
    %265 = vmatpush.bf16.msra.mxu0 %v176
    %266 = vmatpush.bf16.msra.mxu0 %v167
    %267 = vmatmul.bf16.gmra.mxu0 %v201
    %v268 = vpop.f32.mrf.mxu0
    %v269 = vadd.f32 0.0, %v268
    %v270 = vpop.f32.mrf.mxu0
    %v271 = vadd.f32 0.0, %v270
    %272 = vdwg.mxu0
    %273 = vmatpush.bf16.msra.mxu0 0
    %274 = vmatpush.bf16.msra.mxu0 0
    %275 = vmatpush.bf16.msra.mxu0 0
    %276 = vmatpush.bf16.msra.mxu0 0
    %277 = vmatpush.bf16.msra.mxu0 0
    %278 = vmatpush.bf16.msra.mxu0 0
    %279 = vmatpush.bf16.msra.mxu0 %v177
    %280 = vmatpush.bf16.msra.mxu0 %v168
    %281 = vmatmul.bf16.gmra.mxu0 %v201
    %v282 = vpop.f32.mrf.mxu0
    %v283 = vadd.f32 0.0, %v282
    %v284 = vpop.f32.mrf.mxu0
    %v285 = vadd.f32 0.0, %v284
    %286 = vdwg.mxu0
    %287 = vmatpush.bf16.msra.mxu0 0
    %288 = vmatpush.bf16.msra.mxu0 0
    %289 = vmatpush.bf16.msra.mxu0 0
    %290 = vmatpush.bf16.msra.mxu0 0
    %291 = vmatpush.bf16.msra.mxu0 0
    %292 = vmatpush.bf16.msra.mxu0 0
    %293 = vmatpush.bf16.msra.mxu0 %v178
    %294 = vmatpush.bf16.msra.mxu0 %v169
    %295 = vmatmul.bf16.gmra.mxu0 %v201
    %v296 = vpop.f32.mrf.mxu0
    %v297 = vadd.f32 0.0, %v296
    %v298 = vpop.f32.mrf.mxu0
    %v299 = vadd.f32 0.0, %v298
    %300 = vdwg.mxu0
    %301 = vmatpush.bf16.msra.mxu0 0
    %302 = vmatpush.bf16.msra.mxu0 0
    %303 = vmatpush.bf16.msra.mxu0 0
    %304 = vmatpush.bf16.msra.mxu0 0
    %305 = vmatpush.bf16.msra.mxu0 0
    %306 = vmatpush.bf16.msra.mxu0 0
    %307 = vmatpush.bf16.msra.mxu0 %v179
    %308 = vmatpush.bf16.msra.mxu0 %v170
    %309 = vmatmul.bf16.gmra.mxu0 %v201
    %v310 = vpop.f32.mrf.mxu0
    %v311 = vadd.f32 0.0, %v310
    %v312 = vpop.f32.mrf.mxu0
    %v313 = vadd.f32 0.0, %v312
    %314 = vdwg.mxu0
    %315 = vmatpush.bf16.msra.mxu0 0
    %316 = vmatpush.bf16.msra.mxu0 0
    %317 = vmatpush.bf16.msra.mxu0 0
    %318 = vmatpush.bf16.msra.mxu0 0
    %319 = vmatpush.bf16.msra.mxu0 0
    %320 = vmatpush.bf16.msra.mxu0 0
    %321 = vmatpush.bf16.msra.mxu0 %v180
    %322 = vmatpush.bf16.msra.mxu0 %v171
    %323 = vmatmul.bf16.gmra.mxu0 %v201
    %v324 = vpop.f32.mrf.mxu0
    %v325 = vadd.f32 0.0, %v324
    %v326 = vpop.f32.mrf.mxu0
    %v327 = vadd.f32 0.0, %v326
    %328 = vdwg.mxu0
    %v329 = vmax.f32 %v213, %v269
    %v330 = vmax.f32 %v227, %v283
    %v331 = vmax.f32 %v241, %v297
    %v332 = vmax.f32 %v255, %v311
    %v333 = vmax.f32 %v215, %v271
    %v334 = vmax.f32 %v229, %v285
    %v335 = vmax.f32 %v243, %v299
    %v336 = vmax.f32 %v257, %v313
    %v337 = vpack.c.bf16 %v333, %v329
    %v338 = vpack.c.bf16 %v334, %v330
    %v339 = vpack.c.bf16 %v335, %v331
    %v340 = vpack.c.bf16 %v336, %v332
    %v341 = vpack.c.bf16 %v327, %v325
    %v342 = vld [vmem:[#allocation7] sm:$0xff]
    %v343 = vld [vmem:[#allocation7 + $0x8] sm:$0xff]
    %v344 = vld [vmem:[#allocation7 + $0x10] sm:$0xff]
    %v345 = vld [vmem:[#allocation7 + $0x18] sm:$0xf]
    %v346 = vld [vmem:[#allocation7 + $0x1c] sm:$0xff]
    %v347 = vld [vmem:[#allocation7 + $0x24] sm:$0xff]
    %v348 = vld [vmem:[#allocation7 + $0x2c] sm:$0xff]
    %v349 = vld [vmem:[#allocation7 + $0x34] sm:$0xf]
    %v350 = vld [vmem:[#allocation7 + $0x38] sm:$0xff]
    %v351 = vld [vmem:[#allocation7 + $0x40] sm:$0xff]
    %v352 = vld [vmem:[#allocation7 + $0x48] sm:$0xff]
    %v353 = vld [vmem:[#allocation7 + $0x50] sm:$0xf]
    %v354 = vld [vmem:[#allocation7 + $0x54] sm:$0xff]
    %v355 = vld [vmem:[#allocation7 + $0x5c] sm:$0xff]
    %v356 = vld [vmem:[#allocation7 + $0x64] sm:$0xff]
    %v357 = vld [vmem:[#allocation7 + $0x6c] sm:$0xf]
    %v358 = vld [vmem:[#allocation7 + $0x70] sm:$0xff]
    %v359 = vld [vmem:[#allocation7 + $0x78] sm:$0xff]
    %v360 = vld [vmem:[#allocation7 + $0x80] sm:$0xff]
    %v361 = vld [vmem:[#allocation7 + $0x88] sm:$0xf]
    %v362 = vld [vmem:[#allocation7 + $0x8c] sm:$0xff]
    %v363 = vld [vmem:[#allocation7 + $0x94] sm:$0xff]
    %v364 = vld [vmem:[#allocation7 + $0x9c] sm:$0xff]
    %v365 = vld [vmem:[#allocation7 + $0xa4] sm:$0xf]
    %v366 = vld [vmem:[#allocation7 + $0xa8] sm:$0xff]
    %v367 = vld [vmem:[#allocation7 + $0xb0] sm:$0xff]
    %v368 = vld [vmem:[#allocation7 + $0xb8] sm:$0xff]
    %v369 = vld [vmem:[#allocation7 + $0xc0] sm:$0xf]
    %v370 = vld [vmem:[#allocation7 + $0xc4] sm:$0xff]
    %v371 = vld [vmem:[#allocation7 + $0xcc] sm:$0xff]
    %v372 = vld [vmem:[#allocation7 + $0xd4] sm:$0xff]
    %v373 = vld [vmem:[#allocation7 + $0xdc] sm:$0xf]
    %v374 = vld [vmem:[#allocation7 + $0xe0] sm:$0xff]
    %v375 = vld [vmem:[#allocation7 + $0xe8] sm:$0xff]
    %v376 = vld [vmem:[#allocation7 + $0xf0] sm:$0xff]
    %v377 = vld [vmem:[#allocation7 + $0xf8] sm:$0xf]
    %v378 = vld [vmem:[#allocation7 + $0xfc] sm:$0xff]
    %v379 = vld [vmem:[#allocation7 + $0x104] sm:$0xff]
    %v380 = vld [vmem:[#allocation7 + $0x10c] sm:$0xff]
    %v381 = vld [vmem:[#allocation7 + $0x114] sm:$0xf]
    %v382 = vld [vmem:[#allocation7 + $0x118] sm:$0xff]
    %v383 = vld [vmem:[#allocation7 + $0x120] sm:$0xff]
    %v384 = vld [vmem:[#allocation7 + $0x128] sm:$0xff]
    %v385 = vld [vmem:[#allocation7 + $0x130] sm:$0xf]
    %v386 = vld [vmem:[#allocation7 + $0x134] sm:$0xff]
    %v387 = vld [vmem:[#allocation7 + $0x13c] sm:$0xff]
    %v388 = vld [vmem:[#allocation7 + $0x144] sm:$0xff]
    %v389 = vld [vmem:[#allocation7 + $0x14c] sm:$0xf]
    %v390 = vld [vmem:[#allocation7 + $0x150] sm:$0xff]
    %v391 = vld [vmem:[#allocation7 + $0x158] sm:$0xff]
    %v392 = vld [vmem:[#allocation7 + $0x160] sm:$0xff]
    %v393 = vld [vmem:[#allocation7 + $0x168] sm:$0xf]
    %v394 = vld [vmem:[#allocation7 + $0x16c] sm:$0xff]
    %v395 = vld [vmem:[#allocation7 + $0x174] sm:$0xff]
    %v396 = vld [vmem:[#allocation7 + $0x17c] sm:$0xff]
    %v397 = vld [vmem:[#allocation7 + $0x184] sm:$0xf]
    %v398 = vld [vmem:[#allocation7 + $0x188] sm:$0xff]
    %v399 = vld [vmem:[#allocation7 + $0x190] sm:$0xff]
    %v400 = vld [vmem:[#allocation7 + $0x198] sm:$0xff]
    %v401 = vld [vmem:[#allocation7 + $0x1a0] sm:$0xf]
    %v402 = vld [vmem:[#allocation7 + $0x1a4] sm:$0xff]
    %v403 = vld [vmem:[#allocation7 + $0x1ac] sm:$0xff]
    %v404 = vld [vmem:[#allocation7 + $0x1b4] sm:$0xff]
    %v405 = vld [vmem:[#allocation7 + $0x1bc] sm:$0xf]
    %v406 = vld [vmem:[#allocation7 + $0x1c0] sm:$0xff]
    %v407 = vld [vmem:[#allocation7 + $0x1c8] sm:$0xff]
    %v408 = vld [vmem:[#allocation7 + $0x1d0] sm:$0xff]
    %v409 = vld [vmem:[#allocation7 + $0x1d8] sm:$0xf]
    %v410 = vld [vmem:[#allocation7 + $0x1dc] sm:$0xff]
    %v411 = vld [vmem:[#allocation7 + $0x1e4] sm:$0xff]
    %v412 = vld [vmem:[#allocation7 + $0x1ec] sm:$0xff]
    %v413 = vld [vmem:[#allocation7 + $0x1f4] sm:$0xf]
    %v414 = vld [vmem:[#allocation7 + $0x1f8] sm:$0xff]
    %v415 = vld [vmem:[#allocation7 + $0x200] sm:$0xff]
    %v416 = vld [vmem:[#allocation7 + $0x208] sm:$0xff]
    %v417 = vld [vmem:[#allocation7 + $0x210] sm:$0xf]
    %v418 = vld [vmem:[#allocation7 + $0x214] sm:$0xff]
    %v419 = vld [vmem:[#allocation7 + $0x21c] sm:$0xff]
    %v420 = vld [vmem:[#allocation7 + $0x224] sm:$0xff]
    %v421 = vld [vmem:[#allocation7 + $0x22c] sm:$0xf]
    %v422 = vld [vmem:[#allocation7 + $0x230] sm:$0xff]
    %v423 = vld [vmem:[#allocation7 + $0x238] sm:$0xff]
    %v424 = vld [vmem:[#allocation7 + $0x240] sm:$0xff]
    %v425 = vld [vmem:[#allocation7 + $0x248] sm:$0xf]
    %v426 = vld [vmem:[#allocation7 + $0x24c] sm:$0xff]
    %v427 = vld [vmem:[#allocation7 + $0x254] sm:$0xff]
    %v428 = vld [vmem:[#allocation7 + $0x25c] sm:$0xff]
    %v429 = vld [vmem:[#allocation7 + $0x264] sm:$0xf]
    %v430 = vld [vmem:[#allocation7 + $0x268] sm:$0xff]
    %v431 = vld [vmem:[#allocation7 + $0x270] sm:$0xff]
    %v432 = vld [vmem:[#allocation7 + $0x278] sm:$0xff]
    %v433 = vld [vmem:[#allocation7 + $0x280] sm:$0xf]
    %v434 = vld [vmem:[#allocation7 + $0x284] sm:$0xff]
    %v435 = vld [vmem:[#allocation7 + $0x28c] sm:$0xff]
    %v436 = vld [vmem:[#allocation7 + $0x294] sm:$0xff]
    %v437 = vld [vmem:[#allocation7 + $0x29c] sm:$0xf]
    %v438 = vld [vmem:[#allocation7 + $0x2a0] sm:$0xff]
    %v439 = vld [vmem:[#allocation7 + $0x2a8] sm:$0xff]
    %v440 = vld [vmem:[#allocation7 + $0x2b0] sm:$0xff]
    %v441 = vld [vmem:[#allocation7 + $0x2b8] sm:$0xf]
    %v442 = vld [vmem:[#allocation7 + $0x2bc] sm:$0xff]
    %v443 = vld [vmem:[#allocation7 + $0x2c4] sm:$0xff]
    %v444 = vld [vmem:[#allocation7 + $0x2cc] sm:$0xff]
    %v445 = vld [vmem:[#allocation7 + $0x2d4] sm:$0xf]
    %v446 = vld [vmem:[#allocation7 + $0x2d8] sm:$0xff]
    %v447 = vld [vmem:[#allocation7 + $0x2e0] sm:$0xff]
    %v448 = vld [vmem:[#allocation7 + $0x2e8] sm:$0xff]
    %v449 = vld [vmem:[#allocation7 + $0x2f0] sm:$0xf]
    %v450 = vld [vmem:[#allocation7 + $0x2f4] sm:$0xff]
    %v451 = vld [vmem:[#allocation7 + $0x2fc] sm:$0xff]
    %v452 = vld [vmem:[#allocation7 + $0x304] sm:$0xff]
    %v453 = vld [vmem:[#allocation7 + $0x30c] sm:$0xf]
    %v454 = vld [vmem:[#allocation7 + $0x310] sm:$0xff]
    %v455 = vld [vmem:[#allocation7 + $0x318] sm:$0xff]
    %v456 = vld [vmem:[#allocation7 + $0x320] sm:$0xff]
    %v457 = vld [vmem:[#allocation7 + $0x328] sm:$0xf]
    %v458 = vld [vmem:[#allocation7 + $0x32c] sm:$0xff]
    %v459 = vld [vmem:[#allocation7 + $0x334] sm:$0xff]
    %v460 = vld [vmem:[#allocation7 + $0x33c] sm:$0xff]
    %v461 = vld [vmem:[#allocation7 + $0x344] sm:$0xf]
    %v462 = vld [vmem:[#allocation7 + $0x348] sm:$0xff]
    %v463 = vld [vmem:[#allocation7 + $0x350] sm:$0xff]
    %v464 = vld [vmem:[#allocation7 + $0x358] sm:$0xff]
    %v465 = vld [vmem:[#allocation7 + $0x360] sm:$0xf]
    %v466 = vld [vmem:[#allocation7 + $0x364] sm:$0xff]
    %v467 = vld [vmem:[#allocation7 + $0x36c] sm:$0xff]
    %v468 = vld [vmem:[#allocation7 + $0x374] sm:$0xff]
    %v469 = vld [vmem:[#allocation7 + $0x37c] sm:$0xf]
    %v470 = vld [vmem:[#allocation7 + $0x380] sm:$0xff]
    %v471 = vld [vmem:[#allocation7 + $0x388] sm:$0xff]
    %v472 = vld [vmem:[#allocation7 + $0x390] sm:$0xff]
    %v473 = vld [vmem:[#allocation7 + $0x398] sm:$0xf]
    %v474 = vld [vmem:[#allocation7 + $0x39c] sm:$0xff]
    %v475 = vld [vmem:[#allocation7 + $0x3a4] sm:$0xff]
    %v476 = vld [vmem:[#allocation7 + $0x3ac] sm:$0xff]
    %v477 = vld [vmem:[#allocation7 + $0x3b4] sm:$0xf]
    %v478 = vld [vmem:[#allocation7 + $0x3b8] sm:$0xff]
    %v479 = vld [vmem:[#allocation7 + $0x3c0] sm:$0xff]
    %v480 = vld [vmem:[#allocation7 + $0x3c8] sm:$0xff]
    %v481 = vld [vmem:[#allocation7 + $0x3d0] sm:$0xf]
    %v482 = vld [vmem:[#allocation7 + $0x3d4] sm:$0xff]
    %v483 = vld [vmem:[#allocation7 + $0x3dc] sm:$0xff]
    %v484 = vld [vmem:[#allocation7 + $0x3e4] sm:$0xff]
    %v485 = vld [vmem:[#allocation7 + $0x3ec] sm:$0xf]
    %v486 = vld [vmem:[#allocation7 + $0x3f0] sm:$0xff]
    %v487 = vld [vmem:[#allocation7 + $0x3f8] sm:$0xff]
    %v488 = vld [vmem:[#allocation7 + $0x400] sm:$0xff]
    %v489 = vld [vmem:[#allocation7 + $0x408] sm:$0xf]
    %v490 = vld [vmem:[#allocation7 + $0x40c] sm:$0xff]
    %v491 = vld [vmem:[#allocation7 + $0x414] sm:$0xff]
    %v492 = vld [vmem:[#allocation7 + $0x41c] sm:$0xff]
    %v493 = vld [vmem:[#allocation7 + $0x424] sm:$0xf]
    %v494 = vld [vmem:[#allocation7 + $0x428] sm:$0xff]
    %v495 = vld [vmem:[#allocation7 + $0x430] sm:$0xff]
    %v496 = vld [vmem:[#allocation7 + $0x438] sm:$0xff]
    %v497 = vld [vmem:[#allocation7 + $0x440] sm:$0xf]
    %v498 = vld [vmem:[#allocation7 + $0x444] sm:$0xff]
    %v499 = vld [vmem:[#allocation7 + $0x44c] sm:$0xff]
    %v500 = vld [vmem:[#allocation7 + $0x454] sm:$0xff]
    %v501 = vld [vmem:[#allocation7 + $0x45c] sm:$0xf]
    %v502 = vld [vmem:[#allocation7 + $0x460] sm:$0xff]
    %v503 = vld [vmem:[#allocation7 + $0x468] sm:$0xff]
    %v504 = vld [vmem:[#allocation7 + $0x470] sm:$0xff]
    %v505 = vld [vmem:[#allocation7 + $0x478] sm:$0xf]
    %v506 = vld [vmem:[#allocation7 + $0x47c] sm:$0xff]
    %v507 = vld [vmem:[#allocation7 + $0x484] sm:$0xff]
    %v508 = vld [vmem:[#allocation7 + $0x48c] sm:$0xff]
    %v509 = vld [vmem:[#allocation7 + $0x494] sm:$0xf]
    %v510 = vld [vmem:[#allocation7 + $0x498] sm:$0xff]
    %v511 = vld [vmem:[#allocation7 + $0x4a0] sm:$0xff]
    %v512 = vld [vmem:[#allocation7 + $0x4a8] sm:$0xff]
    %v513 = vld [vmem:[#allocation7 + $0x4b0] sm:$0xf]
    %v514 = vld [vmem:[#allocation7 + $0x4b4] sm:$0xff]
    %v515 = vld [vmem:[#allocation7 + $0x4bc] sm:$0xff]
    %v516 = vld [vmem:[#allocation7 + $0x4c4] sm:$0xff]
    %v517 = vld [vmem:[#allocation7 + $0x4cc] sm:$0xf]
    %v518 = vld [vmem:[#allocation7 + $0x4d0] sm:$0xff]
    %v519 = vld [vmem:[#allocation7 + $0x4d8] sm:$0xff]
    %v520 = vld [vmem:[#allocation7 + $0x4e0] sm:$0xff]
    %v521 = vld [vmem:[#allocation7 + $0x4e8] sm:$0xf]
    %v522 = vld [vmem:[#allocation7 + $0x4ec] sm:$0xff]
    %v523 = vld [vmem:[#allocation7 + $0x4f4] sm:$0xff]
    %v524 = vld [vmem:[#allocation7 + $0x4fc] sm:$0xff]
    %v525 = vld [vmem:[#allocation7 + $0x504] sm:$0xf]
    %v526 = vld [vmem:[#allocation7 + $0x508] sm:$0xff]
    %v527 = vld [vmem:[#allocation7 + $0x510] sm:$0xff]
    %v528 = vld [vmem:[#allocation7 + $0x518] sm:$0xff]
    %v529 = vld [vmem:[#allocation7 + $0x520] sm:$0xf]
    %v530 = vld [vmem:[#allocation7 + $0x524] sm:$0xff]
    %v531 = vld [vmem:[#allocation7 + $0x52c] sm:$0xff]
    %v532 = vld [vmem:[#allocation7 + $0x534] sm:$0xff]
    %v533 = vld [vmem:[#allocation7 + $0x53c] sm:$0xf]
    %v534 = vld [vmem:[#allocation7 + $0x540] sm:$0xff]
    %v535 = vld [vmem:[#allocation7 + $0x548] sm:$0xff]
    %v536 = vld [vmem:[#allocation7 + $0x550] sm:$0xff]
    %v537 = vld [vmem:[#allocation7 + $0x558] sm:$0xf]
    %v538 = vld [vmem:[#allocation7 + $0x55c] sm:$0xff]
    %v539 = vld [vmem:[#allocation7 + $0x564] sm:$0xff]
    %v540 = vld [vmem:[#allocation7 + $0x56c] sm:$0xff]
    %v541 = vld [vmem:[#allocation7 + $0x574] sm:$0xf]
    %v542 = vld [vmem:[#allocation7 + $0x578] sm:$0xff]
    %v543 = vld [vmem:[#allocation7 + $0x580] sm:$0xff]
    %v544 = vld [vmem:[#allocation7 + $0x588] sm:$0xff]
    %v545 = vld [vmem:[#allocation7 + $0x590] sm:$0xf]
    %v546 = vld [vmem:[#allocation7 + $0x594] sm:$0xff]
    %v547 = vld [vmem:[#allocation7 + $0x59c] sm:$0xff]
    %v548 = vld [vmem:[#allocation7 + $0x5a4] sm:$0xff]
    %v549 = vld [vmem:[#allocation7 + $0x5ac] sm:$0xf]
    %v550 = vld [vmem:[#allocation7 + $0x5b0] sm:$0xff]
    %v551 = vld [vmem:[#allocation7 + $0x5b8] sm:$0xff]
    %v552 = vld [vmem:[#allocation7 + $0x5c0] sm:$0xff]
    %v553 = vld [vmem:[#allocation7 + $0x5c8] sm:$0xf]
    %v554 = vld [vmem:[#allocation7 + $0x5cc] sm:$0xff]
    %v555 = vld [vmem:[#allocation7 + $0x5d4] sm:$0xff]
    %v556 = vld [vmem:[#allocation7 + $0x5dc] sm:$0xff]
    %v557 = vld [vmem:[#allocation7 + $0x5e4] sm:$0xf]
    %v558 = vld [vmem:[#allocation7 + $0x5e8] sm:$0xff]
    %v559 = vld [vmem:[#allocation7 + $0x5f0] sm:$0xff]
    %v560 = vld [vmem:[#allocation7 + $0x5f8] sm:$0xff]
    %v561 = vld [vmem:[#allocation7 + $0x600] sm:$0xf]
    %v562 = vld [vmem:[#allocation7 + $0x604] sm:$0xff]
    %v563 = vld [vmem:[#allocation7 + $0x60c] sm:$0xff]
    %v564 = vld [vmem:[#allocation7 + $0x614] sm:$0xff]
    %v565 = vld [vmem:[#allocation7 + $0x61c] sm:$0xf]
    %v566 = vld [vmem:[#allocation7 + $0x620] sm:$0xff]
    %v567 = vld [vmem:[#allocation7 + $0x628] sm:$0xff]
    %v568 = vld [vmem:[#allocation7 + $0x630] sm:$0xff]
    %v569 = vld [vmem:[#allocation7 + $0x638] sm:$0xf]
    %v570 = vld [vmem:[#allocation7 + $0x63c] sm:$0xff]
    %v571 = vld [vmem:[#allocation7 + $0x644] sm:$0xff]
    %v572 = vld [vmem:[#allocation7 + $0x64c] sm:$0xff]
    %v573 = vld [vmem:[#allocation7 + $0x654] sm:$0xf]
    %v574 = vld [vmem:[#allocation7 + $0x658] sm:$0xff]
    %v575 = vld [vmem:[#allocation7 + $0x660] sm:$0xff]
    %v576 = vld [vmem:[#allocation7 + $0x668] sm:$0xff]
    %v577 = vld [vmem:[#allocation7 + $0x670] sm:$0xf]
    %v578 = vld [vmem:[#allocation7 + $0x674] sm:$0xff]
    %v579 = vld [vmem:[#allocation7 + $0x67c] sm:$0xff]
    %v580 = vld [vmem:[#allocation7 + $0x684] sm:$0xff]
    %v581 = vld [vmem:[#allocation7 + $0x68c] sm:$0xf]
    %v582 = vld [vmem:[#allocation7 + $0x690] sm:$0xff]
    %v583 = vld [vmem:[#allocation7 + $0x698] sm:$0xff]
    %v584 = vld [vmem:[#allocation7 + $0x6a0] sm:$0xff]
    %v585 = vld [vmem:[#allocation7 + $0x6a8] sm:$0xf]
    %v586 = vld [vmem:[#allocation7 + $0x6ac] sm:$0xff]
    %v587 = vld [vmem:[#allocation7 + $0x6b4] sm:$0xff]
    %v588 = vld [vmem:[#allocation7 + $0x6bc] sm:$0xff]
    %v589 = vld [vmem:[#allocation7 + $0x6c4] sm:$0xf]
    %v590 = vld [vmem:[#allocation7 + $0x6c8] sm:$0xff]
    %v591 = vld [vmem:[#allocation7 + $0x6d0] sm:$0xff]
    %v592 = vld [vmem:[#allocation7 + $0x6d8] sm:$0xff]
    %v593 = vld [vmem:[#allocation7 + $0x6e0] sm:$0xf]
    %v594 = vld [vmem:[#allocation7 + $0x6e4] sm:$0xff]
    %v595 = vld [vmem:[#allocation7 + $0x6ec] sm:$0xff]
    %v596 = vld [vmem:[#allocation7 + $0x6f4] sm:$0xff]
    %v597 = vld [vmem:[#allocation7 + $0x6fc] sm:$0xf]
    %v598 = vld [vmem:[#allocation7 + $0x700] sm:$0xff]
    %v599 = vld [vmem:[#allocation7 + $0x708] sm:$0xff]
    %v600 = vld [vmem:[#allocation7 + $0x710] sm:$0xff]
    %v601 = vld [vmem:[#allocation7 + $0x718] sm:$0xf]
    %v602 = vld [vmem:[#allocation7 + $0x71c] sm:$0xff]
    %v603 = vld [vmem:[#allocation7 + $0x724] sm:$0xff]
    %v604 = vld [vmem:[#allocation7 + $0x72c] sm:$0xff]
    %v605 = vld [vmem:[#allocation7 + $0x734] sm:$0xf]
    %v606 = vld [vmem:[#allocation7 + $0x738] sm:$0xff]
    %v607 = vld [vmem:[#allocation7 + $0x740] sm:$0xff]
    %v608 = vld [vmem:[#allocation7 + $0x748] sm:$0xff]
    %v609 = vld [vmem:[#allocation7 + $0x750] sm:$0xf]
    %v610 = vld [vmem:[#allocation7 + $0x754] sm:$0xff]
    %v611 = vld [vmem:[#allocation7 + $0x75c] sm:$0xff]
    %v612 = vld [vmem:[#allocation7 + $0x764] sm:$0xff]
    %v613 = vld [vmem:[#allocation7 + $0x76c] sm:$0xf]
    %v614 = vld [vmem:[#allocation7 + $0x770] sm:$0xff]
    %v615 = vld [vmem:[#allocation7 + $0x778] sm:$0xff]
    %v616 = vld [vmem:[#allocation7 + $0x780] sm:$0xff]
    %v617 = vld [vmem:[#allocation7 + $0x788] sm:$0xf]
    %v618 = vld [vmem:[#allocation7 + $0x78c] sm:$0xff]
    %v619 = vld [vmem:[#allocation7 + $0x794] sm:$0xff]
    %v620 = vld [vmem:[#allocation7 + $0x79c] sm:$0xff]
    %v621 = vld [vmem:[#allocation7 + $0x7a4] sm:$0xf]
    %v622 = vld [vmem:[#allocation7 + $0x7a8] sm:$0xff]
    %v623 = vld [vmem:[#allocation7 + $0x7b0] sm:$0xff]
    %v624 = vld [vmem:[#allocation7 + $0x7b8] sm:$0xff]
    %v625 = vld [vmem:[#allocation7 + $0x7c0] sm:$0xf]
    %v626 = vld [vmem:[#allocation7 + $0x7c4] sm:$0xff]
    %v627 = vld [vmem:[#allocation7 + $0x7cc] sm:$0xff]
    %v628 = vld [vmem:[#allocation7 + $0x7d4] sm:$0xff]
    %v629 = vld [vmem:[#allocation7 + $0x7dc] sm:$0xf]
    %v630 = vld [vmem:[#allocation7 + $0x7e0] sm:$0xff]
    %v631 = vld [vmem:[#allocation7 + $0x7e8] sm:$0xff]
    %v632 = vld [vmem:[#allocation7 + $0x7f0] sm:$0xff]
    %v633 = vld [vmem:[#allocation7 + $0x7f8] sm:$0xf]
    %v634 = vld [vmem:[#allocation7 + $0x7fc] sm:$0xff]
    %v635 = vld [vmem:[#allocation7 + $0x804] sm:$0xff]
    %v636 = vld [vmem:[#allocation7 + $0x80c] sm:$0xff]
    %v637 = vld [vmem:[#allocation7 + $0x814] sm:$0xf]
    %v638 = vld [vmem:[#allocation7 + $0x818] sm:$0xff]
    %v639 = vld [vmem:[#allocation7 + $0x820] sm:$0xff]
    %v640 = vld [vmem:[#allocation7 + $0x828] sm:$0xff]
    %v641 = vld [vmem:[#allocation7 + $0x830] sm:$0xf]
    %v642 = vld [vmem:[#allocation7 + $0x834] sm:$0xff]
    %v643 = vld [vmem:[#allocation7 + $0x83c] sm:$0xff]
    %v644 = vld [vmem:[#allocation7 + $0x844] sm:$0xff]
    %v645 = vld [vmem:[#allocation7 + $0x84c] sm:$0xf]
    %v646 = vld [vmem:[#allocation7 + $0x850] sm:$0xff]
    %v647 = vld [vmem:[#allocation7 + $0x858] sm:$0xff]
    %v648 = vld [vmem:[#allocation7 + $0x860] sm:$0xff]
    %v649 = vld [vmem:[#allocation7 + $0x868] sm:$0xf]
    %v650 = vld [vmem:[#allocation7 + $0x86c] sm:$0xff]
    %v651 = vld [vmem:[#allocation7 + $0x874] sm:$0xff]
    %v652 = vld [vmem:[#allocation7 + $0x87c] sm:$0xff]
    %v653 = vld [vmem:[#allocation7 + $0x884] sm:$0xf]
    %v654 = vld [vmem:[#allocation7 + $0x888] sm:$0xff]
    %v655 = vld [vmem:[#allocation7 + $0x890] sm:$0xff]
    %v656 = vld [vmem:[#allocation7 + $0x898] sm:$0xff]
    %v657 = vld [vmem:[#allocation7 + $0x8a0] sm:$0xf]
    %v658 = vld [vmem:[#allocation7 + $0x8a4] sm:$0xff]
    %v659 = vld [vmem:[#allocation7 + $0x8ac] sm:$0xff]
    %v660 = vld [vmem:[#allocation7 + $0x8b4] sm:$0xff]
    %v661 = vld [vmem:[#allocation7 + $0x8bc] sm:$0xf]
    %v662 = vld [vmem:[#allocation8] sm:$0xff]
    %v664 = vperm.slane %v662, 0
    %v665 = vperm.slane %v662, 1
    %v666 = vperm.slane %v662, 2
    %v667 = vperm.slane %v662, 3
    %v668 = vperm.slane %v662, 4
    %v669 = vperm.slane %v662, 5
    %v670 = vperm.slane %v662, 6
    %v998 = vunpack.c.l.b16 %v342
    %v999 = vunpack.c.h.b16 %v342
    %v1000 = vunpack.c.l.b16 %v343
    %v1001 = vunpack.c.h.b16 %v343
    %v1002 = vunpack.c.l.b16 %v344
    %v1003 = vunpack.c.h.b16 %v344
    %v1004 = vunpack.c.l.b16 %v345
    %v1005 = vunpack.c.l.b16 %v346
    %v1006 = vunpack.c.h.b16 %v346
    %v1007 = vunpack.c.l.b16 %v347
    %v1008 = vunpack.c.h.b16 %v347
    %v1009 = vunpack.c.l.b16 %v348
    %v1010 = vunpack.c.h.b16 %v348
    %v1011 = vunpack.c.l.b16 %v349
    %v1012 = vunpack.c.l.b16 %v350
    %v1013 = vunpack.c.h.b16 %v350
    %v1014 = vunpack.c.l.b16 %v351
    %v1015 = vunpack.c.h.b16 %v351
    %v1016 = vunpack.c.l.b16 %v352
    %v1017 = vunpack.c.h.b16 %v352
    %v1018 = vunpack.c.l.b16 %v353
    %v1019 = vunpack.c.l.b16 %v354
    %v1020 = vunpack.c.h.b16 %v354
    %v1021 = vunpack.c.l.b16 %v355
    %v1022 = vunpack.c.h.b16 %v355
    %v1023 = vunpack.c.l.b16 %v356
    %v1024 = vunpack.c.h.b16 %v356
    %v1025 = vunpack.c.l.b16 %v357
    %v1026 = vunpack.c.l.b16 %v358
    %v1027 = vunpack.c.h.b16 %v358
    %v1028 = vunpack.c.l.b16 %v359
    %v1029 = vunpack.c.h.b16 %v359
    %v1030 = vunpack.c.l.b16 %v360
    %v1031 = vunpack.c.h.b16 %v360
    %v1032 = vunpack.c.l.b16 %v361
    %v1033 = vunpack.c.l.b16 %v362
    %v1034 = vunpack.c.h.b16 %v362
    %v1035 = vunpack.c.l.b16 %v363
    %v1036 = vunpack.c.h.b16 %v363
    %v1037 = vunpack.c.l.b16 %v364
    %v1038 = vunpack.c.h.b16 %v364
    %v1039 = vunpack.c.l.b16 %v365
    %v1040 = vunpack.c.l.b16 %v366
    %v1041 = vunpack.c.h.b16 %v366
    %v1042 = vunpack.c.l.b16 %v367
    %v1043 = vunpack.c.h.b16 %v367
    %v1044 = vunpack.c.l.b16 %v368
    %v1045 = vunpack.c.h.b16 %v368
    %v1046 = vunpack.c.l.b16 %v369
    %v1047 = vunpack.c.l.b16 %v370
    %v1048 = vunpack.c.h.b16 %v370
    %v1049 = vunpack.c.l.b16 %v371
    %v1050 = vunpack.c.h.b16 %v371
    %v1051 = vunpack.c.l.b16 %v372
    %v1052 = vunpack.c.h.b16 %v372
    %v1053 = vunpack.c.l.b16 %v373
    %v1054 = vunpack.c.l.b16 %v374
    %v1055 = vunpack.c.h.b16 %v374
    %v1056 = vunpack.c.l.b16 %v375
    %v1057 = vunpack.c.h.b16 %v375
    %v1058 = vunpack.c.l.b16 %v376
    %v1059 = vunpack.c.h.b16 %v376
    %v1060 = vunpack.c.l.b16 %v377
    %v1061 = vunpack.c.l.b16 %v378
    %v1062 = vunpack.c.h.b16 %v378
    %v1063 = vunpack.c.l.b16 %v379
    %v1064 = vunpack.c.h.b16 %v379
    %v1065 = vunpack.c.l.b16 %v380
    %v1066 = vunpack.c.h.b16 %v380
    %v1067 = vunpack.c.l.b16 %v381
    %v1068 = vunpack.c.l.b16 %v382
    %v1069 = vunpack.c.h.b16 %v382
    %v1070 = vunpack.c.l.b16 %v383
    %v1071 = vunpack.c.h.b16 %v383
    %v1072 = vunpack.c.l.b16 %v384
    %v1073 = vunpack.c.h.b16 %v384
    %v1074 = vunpack.c.l.b16 %v385
    %v1075 = vunpack.c.l.b16 %v386
    %v1076 = vunpack.c.h.b16 %v386
    %v1077 = vunpack.c.l.b16 %v387
    %v1078 = vunpack.c.h.b16 %v387
    %v1079 = vunpack.c.l.b16 %v388
    %v1080 = vunpack.c.h.b16 %v388
    %v1081 = vunpack.c.l.b16 %v389
    %v1082 = vunpack.c.l.b16 %v390
    %v1083 = vunpack.c.h.b16 %v390
    %v1084 = vunpack.c.l.b16 %v391
    %v1085 = vunpack.c.h.b16 %v391
    %v1086 = vunpack.c.l.b16 %v392
    %v1087 = vunpack.c.h.b16 %v392
    %v1088 = vunpack.c.l.b16 %v393
    %v1089 = vunpack.c.l.b16 %v394
    %v1090 = vunpack.c.h.b16 %v394
    %v1091 = vunpack.c.l.b16 %v395
    %v1092 = vunpack.c.h.b16 %v395
    %v1093 = vunpack.c.l.b16 %v396
    %v1094 = vunpack.c.h.b16 %v396
    %v1095 = vunpack.c.l.b16 %v397
    %v1096 = vunpack.c.l.b16 %v398
    %v1097 = vunpack.c.h.b16 %v398
    %v1098 = vunpack.c.l.b16 %v399
    %v1099 = vunpack.c.h.b16 %v399
    %v1100 = vunpack.c.l.b16 %v400
    %v1101 = vunpack.c.h.b16 %v400
    %v1102 = vunpack.c.l.b16 %v401
    %v1103 = vunpack.c.l.b16 %v402
    %v1104 = vunpack.c.h.b16 %v402
    %v1105 = vunpack.c.l.b16 %v403
    %v1106 = vunpack.c.h.b16 %v403
    %v1107 = vunpack.c.l.b16 %v404
    %v1108 = vunpack.c.h.b16 %v404
    %v1109 = vunpack.c.l.b16 %v405
    %v1110 = vunpack.c.l.b16 %v406
    %v1111 = vunpack.c.h.b16 %v406
    %v1112 = vunpack.c.l.b16 %v407
    %v1113 = vunpack.c.h.b16 %v407
    %v1114 = vunpack.c.l.b16 %v408
    %v1115 = vunpack.c.h.b16 %v408
    %v1116 = vunpack.c.l.b16 %v409
    %v1117 = vunpack.c.l.b16 %v410
    %v1118 = vunpack.c.h.b16 %v410
    %v1119 = vunpack.c.l.b16 %v411
    %v1120 = vunpack.c.h.b16 %v411
    %v1121 = vunpack.c.l.b16 %v412
    %v1122 = vunpack.c.h.b16 %v412
    %v1123 = vunpack.c.l.b16 %v413
    %v1124 = vunpack.c.l.b16 %v414
    %v1125 = vunpack.c.h.b16 %v414
    %v1126 = vunpack.c.l.b16 %v415
    %v1127 = vunpack.c.h.b16 %v415
    %v1128 = vunpack.c.l.b16 %v416
    %v1129 = vunpack.c.h.b16 %v416
    %v1130 = vunpack.c.l.b16 %v417
    %v1131 = vunpack.c.l.b16 %v418
    %v1132 = vunpack.c.h.b16 %v418
    %v1133 = vunpack.c.l.b16 %v419
    %v1134 = vunpack.c.h.b16 %v419
    %v1135 = vunpack.c.l.b16 %v420
    %v1136 = vunpack.c.h.b16 %v420
    %v1137 = vunpack.c.l.b16 %v421
    %v1138 = vunpack.c.l.b16 %v422
    %v1139 = vunpack.c.h.b16 %v422
    %v1140 = vunpack.c.l.b16 %v423
    %v1141 = vunpack.c.h.b16 %v423
    %v1142 = vunpack.c.l.b16 %v424
    %v1143 = vunpack.c.h.b16 %v424
    %v1144 = vunpack.c.l.b16 %v425
    %v1145 = vunpack.c.l.b16 %v426
    %v1146 = vunpack.c.h.b16 %v426
    %v1147 = vunpack.c.l.b16 %v427
    %v1148 = vunpack.c.h.b16 %v427
    %v1149 = vunpack.c.l.b16 %v428
    %v1150 = vunpack.c.h.b16 %v428
    %v1151 = vunpack.c.l.b16 %v429
    %v1152 = vunpack.c.l.b16 %v430
    %v1153 = vunpack.c.h.b16 %v430
    %v1154 = vunpack.c.l.b16 %v431
    %v1155 = vunpack.c.h.b16 %v431
    %v1156 = vunpack.c.l.b16 %v432
    %v1157 = vunpack.c.h.b16 %v432
    %v1158 = vunpack.c.l.b16 %v433
    %v1159 = vunpack.c.l.b16 %v434
    %v1160 = vunpack.c.h.b16 %v434
    %v1161 = vunpack.c.l.b16 %v435
    %v1162 = vunpack.c.h.b16 %v435
    %v1163 = vunpack.c.l.b16 %v436
    %v1164 = vunpack.c.h.b16 %v436
    %v1165 = vunpack.c.l.b16 %v437
    %v1166 = vunpack.c.l.b16 %v438
    %v1167 = vunpack.c.h.b16 %v438
    %v1168 = vunpack.c.l.b16 %v439
    %v1169 = vunpack.c.h.b16 %v439
    %v1170 = vunpack.c.l.b16 %v440
    %v1171 = vunpack.c.h.b16 %v440
    %v1172 = vunpack.c.l.b16 %v441
    %v1173 = vunpack.c.l.b16 %v442
    %v1174 = vunpack.c.h.b16 %v442
    %v1175 = vunpack.c.l.b16 %v443
    %v1176 = vunpack.c.h.b16 %v443
    %v1177 = vunpack.c.l.b16 %v444
    %v1178 = vunpack.c.h.b16 %v444
    %v1179 = vunpack.c.l.b16 %v445
    %v1180 = vunpack.c.l.b16 %v446
    %v1181 = vunpack.c.h.b16 %v446
    %v1182 = vunpack.c.l.b16 %v447
    %v1183 = vunpack.c.h.b16 %v447
    %v1184 = vunpack.c.l.b16 %v448
    %v1185 = vunpack.c.h.b16 %v448
    %v1186 = vunpack.c.l.b16 %v449
    %v1187 = vunpack.c.l.b16 %v450
    %v1188 = vunpack.c.h.b16 %v450
    %v1189 = vunpack.c.l.b16 %v451
    %v1190 = vunpack.c.h.b16 %v451
    %v1191 = vunpack.c.l.b16 %v452
    %v1192 = vunpack.c.h.b16 %v452
    %v1193 = vunpack.c.l.b16 %v453
    %v1194 = vunpack.c.l.b16 %v454
    %v1195 = vunpack.c.h.b16 %v454
    %v1196 = vunpack.c.l.b16 %v455
    %v1197 = vunpack.c.h.b16 %v455
    %v1198 = vunpack.c.l.b16 %v456
    %v1199 = vunpack.c.h.b16 %v456
    %v1200 = vunpack.c.l.b16 %v457
    %v1201 = vunpack.c.l.b16 %v458
    %v1202 = vunpack.c.h.b16 %v458
    %v1203 = vunpack.c.l.b16 %v459
    %v1204 = vunpack.c.h.b16 %v459
    %v1205 = vunpack.c.l.b16 %v460
    %v1206 = vunpack.c.h.b16 %v460
    %v1207 = vunpack.c.l.b16 %v461
    %v1208 = vunpack.c.l.b16 %v462
    %v1209 = vunpack.c.h.b16 %v462
    %v1210 = vunpack.c.l.b16 %v463
    %v1211 = vunpack.c.h.b16 %v463
    %v1212 = vunpack.c.l.b16 %v464
    %v1213 = vunpack.c.h.b16 %v464
    %v1214 = vunpack.c.l.b16 %v465
    %v1215 = vunpack.c.l.b16 %v466
    %v1216 = vunpack.c.h.b16 %v466
    %v1217 = vunpack.c.l.b16 %v467
    %v1218 = vunpack.c.h.b16 %v467
    %v1219 = vunpack.c.l.b16 %v468
    %v1220 = vunpack.c.h.b16 %v468
    %v1221 = vunpack.c.l.b16 %v469
    %v1222 = vunpack.c.l.b16 %v470
    %v1223 = vunpack.c.h.b16 %v470
    %v1224 = vunpack.c.l.b16 %v471
    %v1225 = vunpack.c.h.b16 %v471
    %v1226 = vunpack.c.l.b16 %v472
    %v1227 = vunpack.c.h.b16 %v472
    %v1228 = vunpack.c.l.b16 %v473
    %v1229 = vunpack.c.l.b16 %v474
    %v1230 = vunpack.c.h.b16 %v474
    %v1231 = vunpack.c.l.b16 %v475
    %v1232 = vunpack.c.h.b16 %v475
    %v1233 = vunpack.c.l.b16 %v476
    %v1234 = vunpack.c.h.b16 %v476
    %v1235 = vunpack.c.l.b16 %v477
    %v1236 = vunpack.c.l.b16 %v478
    %v1237 = vunpack.c.h.b16 %v478
    %v1238 = vunpack.c.l.b16 %v479
    %v1239 = vunpack.c.h.b16 %v479
    %v1240 = vunpack.c.l.b16 %v480
    %v1241 = vunpack.c.h.b16 %v480
    %v1242 = vunpack.c.l.b16 %v481
    %v1243 = vunpack.c.l.b16 %v482
    %v1244 = vunpack.c.h.b16 %v482
    %v1245 = vunpack.c.l.b16 %v483
    %v1246 = vunpack.c.h.b16 %v483
    %v1247 = vunpack.c.l.b16 %v484
    %v1248 = vunpack.c.h.b16 %v484
    %v1249 = vunpack.c.l.b16 %v485
    %v1250 = vunpack.c.l.b16 %v486
    %v1251 = vunpack.c.h.b16 %v486
    %v1252 = vunpack.c.l.b16 %v487
    %v1253 = vunpack.c.h.b16 %v487
    %v1254 = vunpack.c.l.b16 %v488
    %v1255 = vunpack.c.h.b16 %v488
    %v1256 = vunpack.c.l.b16 %v489
    %v1257 = vunpack.c.l.b16 %v490
    %v1258 = vunpack.c.h.b16 %v490
    %v1259 = vunpack.c.l.b16 %v491
    %v1260 = vunpack.c.h.b16 %v491
    %v1261 = vunpack.c.l.b16 %v492
    %v1262 = vunpack.c.h.b16 %v492
    %v1263 = vunpack.c.l.b16 %v493
    %v1264 = vunpack.c.l.b16 %v494
    %v1265 = vunpack.c.h.b16 %v494
    %v1266 = vunpack.c.l.b16 %v495
    %v1267 = vunpack.c.h.b16 %v495
    %v1268 = vunpack.c.l.b16 %v496
    %v1269 = vunpack.c.h.b16 %v496
    %v1270 = vunpack.c.l.b16 %v497
    %v1271 = vunpack.c.l.b16 %v498
    %v1272 = vunpack.c.h.b16 %v498
    %v1273 = vunpack.c.l.b16 %v499
    %v1274 = vunpack.c.h.b16 %v499
    %v1275 = vunpack.c.l.b16 %v500
    %v1276 = vunpack.c.h.b16 %v500
    %v1277 = vunpack.c.l.b16 %v501
    %v1278 = vunpack.c.l.b16 %v502
    %v1279 = vunpack.c.h.b16 %v502
    %v1280 = vunpack.c.l.b16 %v503
    %v1281 = vunpack.c.h.b16 %v503
    %v1282 = vunpack.c.l.b16 %v504
    %v1283 = vunpack.c.h.b16 %v504
    %v1284 = vunpack.c.l.b16 %v505
    %v1285 = vunpack.c.l.b16 %v506
    %v1286 = vunpack.c.h.b16 %v506
    %v1287 = vunpack.c.l.b16 %v507
    %v1288 = vunpack.c.h.b16 %v507
    %v1289 = vunpack.c.l.b16 %v508
    %v1290 = vunpack.c.h.b16 %v508
    %v1291 = vunpack.c.l.b16 %v509
    %v1292 = vunpack.c.l.b16 %v510
    %v1293 = vunpack.c.h.b16 %v510
    %v1294 = vunpack.c.l.b16 %v511
    %v1295 = vunpack.c.h.b16 %v511
    %v1296 = vunpack.c.l.b16 %v512
    %v1297 = vunpack.c.h.b16 %v512
    %v1298 = vunpack.c.l.b16 %v513
    %v1299 = vunpack.c.l.b16 %v514
    %v1300 = vunpack.c.h.b16 %v514
    %v1301 = vunpack.c.l.b16 %v515
    %v1302 = vunpack.c.h.b16 %v515
    %v1303 = vunpack.c.l.b16 %v516
    %v1304 = vunpack.c.h.b16 %v516
    %v1305 = vunpack.c.l.b16 %v517
    %v1306 = vunpack.c.l.b16 %v518
    %v1307 = vunpack.c.h.b16 %v518
    %v1308 = vunpack.c.l.b16 %v519
    %v1309 = vunpack.c.h.b16 %v519
    %v1310 = vunpack.c.l.b16 %v520
    %v1311 = vunpack.c.h.b16 %v520
    %v1312 = vunpack.c.l.b16 %v521
    %v1313 = vunpack.c.l.b16 %v522
    %v1314 = vunpack.c.h.b16 %v522
    %v1315 = vunpack.c.l.b16 %v523
    %v1316 = vunpack.c.h.b16 %v523
    %v1317 = vunpack.c.l.b16 %v524
    %v1318 = vunpack.c.h.b16 %v524
    %v1319 = vunpack.c.l.b16 %v525
    %v1320 = vunpack.c.l.b16 %v526
    %v1321 = vunpack.c.h.b16 %v526
    %v1322 = vunpack.c.l.b16 %v527
    %v1323 = vunpack.c.h.b16 %v527
    %v1324 = vunpack.c.l.b16 %v528
    %v1325 = vunpack.c.h.b16 %v528
    %v1326 = vunpack.c.l.b16 %v529
    %v1327 = vunpack.c.l.b16 %v530
    %v1328 = vunpack.c.h.b16 %v530
    %v1329 = vunpack.c.l.b16 %v531
    %v1330 = vunpack.c.h.b16 %v531
    %v1331 = vunpack.c.l.b16 %v532
    %v1332 = vunpack.c.h.b16 %v532
    %v1333 = vunpack.c.l.b16 %v533
    %v1334 = vunpack.c.l.b16 %v534
    %v1335 = vunpack.c.h.b16 %v534
    %v1336 = vunpack.c.l.b16 %v535
    %v1337 = vunpack.c.h.b16 %v535
    %v1338 = vunpack.c.l.b16 %v536
    %v1339 = vunpack.c.h.b16 %v536
    %v1340 = vunpack.c.l.b16 %v537
    %v1341 = vunpack.c.l.b16 %v538
    %v1342 = vunpack.c.h.b16 %v538
    %v1343 = vunpack.c.l.b16 %v539
    %v1344 = vunpack.c.h.b16 %v539
    %v1345 = vunpack.c.l.b16 %v540
    %v1346 = vunpack.c.h.b16 %v540
    %v1347 = vunpack.c.l.b16 %v541
    %v1348 = vunpack.c.l.b16 %v542
    %v1349 = vunpack.c.h.b16 %v542
    %v1350 = vunpack.c.l.b16 %v543
    %v1351 = vunpack.c.h.b16 %v543
    %v1352 = vunpack.c.l.b16 %v544
    %v1353 = vunpack.c.h.b16 %v544
    %v1354 = vunpack.c.l.b16 %v545
    %v1355 = vunpack.c.l.b16 %v546
    %v1356 = vunpack.c.h.b16 %v546
    %v1357 = vunpack.c.l.b16 %v547
    %v1358 = vunpack.c.h.b16 %v547
    %v1359 = vunpack.c.l.b16 %v548
    %v1360 = vunpack.c.h.b16 %v548
    %v1361 = vunpack.c.l.b16 %v549
    %v1362 = vunpack.c.l.b16 %v550
    %v1363 = vunpack.c.h.b16 %v550
    %v1364 = vunpack.c.l.b16 %v551
    %v1365 = vunpack.c.h.b16 %v551
    %v1366 = vunpack.c.l.b16 %v552
    %v1367 = vunpack.c.h.b16 %v552
    %v1368 = vunpack.c.l.b16 %v553
    %v1369 = vunpack.c.l.b16 %v554
    %v1370 = vunpack.c.h.b16 %v554
    %v1371 = vunpack.c.l.b16 %v555
    %v1372 = vunpack.c.h.b16 %v555
    %v1373 = vunpack.c.l.b16 %v556
    %v1374 = vunpack.c.h.b16 %v556
    %v1375 = vunpack.c.l.b16 %v557
    %v1376 = vunpack.c.l.b16 %v558
    %v1377 = vunpack.c.h.b16 %v558
    %v1378 = vunpack.c.l.b16 %v559
    %v1379 = vunpack.c.h.b16 %v559
    %v1380 = vunpack.c.l.b16 %v560
    %v1381 = vunpack.c.h.b16 %v560
    %v1382 = vunpack.c.l.b16 %v561
    %v1383 = vunpack.c.l.b16 %v562
    %v1384 = vunpack.c.h.b16 %v562
    %v1385 = vunpack.c.l.b16 %v563
    %v1386 = vunpack.c.h.b16 %v563
    %v1387 = vunpack.c.l.b16 %v564
    %v1388 = vunpack.c.h.b16 %v564
    %v1389 = vunpack.c.l.b16 %v565
    %v1390 = vunpack.c.l.b16 %v566
    %v1391 = vunpack.c.h.b16 %v566
    %v1392 = vunpack.c.l.b16 %v567
    %v1393 = vunpack.c.h.b16 %v567
    %v1394 = vunpack.c.l.b16 %v568
    %v1395 = vunpack.c.h.b16 %v568
    %v1396 = vunpack.c.l.b16 %v569
    %v1397 = vunpack.c.l.b16 %v570
    %v1398 = vunpack.c.h.b16 %v570
    %v1399 = vunpack.c.l.b16 %v571
    %v1400 = vunpack.c.h.b16 %v571
    %v1401 = vunpack.c.l.b16 %v572
    %v1402 = vunpack.c.h.b16 %v572
    %v1403 = vunpack.c.l.b16 %v573
    %v1404 = vunpack.c.l.b16 %v574
    %v1405 = vunpack.c.h.b16 %v574
    %v1406 = vunpack.c.l.b16 %v575
    %v1407 = vunpack.c.h.b16 %v575
    %v1408 = vunpack.c.l.b16 %v576
    %v1409 = vunpack.c.h.b16 %v576
    %v1410 = vunpack.c.l.b16 %v577
    %v1411 = vunpack.c.l.b16 %v578
    %v1412 = vunpack.c.h.b16 %v578
    %v1413 = vunpack.c.l.b16 %v579
    %v1414 = vunpack.c.h.b16 %v579
    %v1415 = vunpack.c.l.b16 %v580
    %v1416 = vunpack.c.h.b16 %v580
    %v1417 = vunpack.c.l.b16 %v581
    %v1418 = vunpack.c.l.b16 %v582
    %v1419 = vunpack.c.h.b16 %v582
    %v1420 = vunpack.c.l.b16 %v583
    %v1421 = vunpack.c.h.b16 %v583
    %v1422 = vunpack.c.l.b16 %v584
    %v1423 = vunpack.c.h.b16 %v584
    %v1424 = vunpack.c.l.b16 %v585
    %v1425 = vunpack.c.l.b16 %v586
    %v1426 = vunpack.c.h.b16 %v586
    %v1427 = vunpack.c.l.b16 %v587
    %v1428 = vunpack.c.h.b16 %v587
    %v1429 = vunpack.c.l.b16 %v588
    %v1430 = vunpack.c.h.b16 %v588
    %v1431 = vunpack.c.l.b16 %v589
    %v1432 = vunpack.c.l.b16 %v590
    %v1433 = vunpack.c.h.b16 %v590
    %v1434 = vunpack.c.l.b16 %v591
    %v1435 = vunpack.c.h.b16 %v591
    %v1436 = vunpack.c.l.b16 %v592
    %v1437 = vunpack.c.h.b16 %v592
    %v1438 = vunpack.c.l.b16 %v593
    %v1439 = vunpack.c.l.b16 %v594
    %v1440 = vunpack.c.h.b16 %v594
    %v1441 = vunpack.c.l.b16 %v595
    %v1442 = vunpack.c.h.b16 %v595
    %v1443 = vunpack.c.l.b16 %v596
    %v1444 = vunpack.c.h.b16 %v596
    %v1445 = vunpack.c.l.b16 %v597
    %v1446 = vunpack.c.l.b16 %v598
    %v1447 = vunpack.c.h.b16 %v598
    %v1448 = vunpack.c.l.b16 %v599
    %v1449 = vunpack.c.h.b16 %v599
    %v1450 = vunpack.c.l.b16 %v600
    %v1451 = vunpack.c.h.b16 %v600
    %v1452 = vunpack.c.l.b16 %v601
    %v1453 = vunpack.c.l.b16 %v602
    %v1454 = vunpack.c.h.b16 %v602
    %v1455 = vunpack.c.l.b16 %v603
    %v1456 = vunpack.c.h.b16 %v603
    %v1457 = vunpack.c.l.b16 %v604
    %v1458 = vunpack.c.h.b16 %v604
    %v1459 = vunpack.c.l.b16 %v605
    %v1460 = vunpack.c.l.b16 %v606
    %v1461 = vunpack.c.h.b16 %v606
    %v1462 = vunpack.c.l.b16 %v607
    %v1463 = vunpack.c.h.b16 %v607
    %v1464 = vunpack.c.l.b16 %v608
    %v1465 = vunpack.c.h.b16 %v608
    %v1466 = vunpack.c.l.b16 %v609
    %v1467 = vunpack.c.l.b16 %v610
    %v1468 = vunpack.c.h.b16 %v610
    %v1469 = vunpack.c.l.b16 %v611
    %v1470 = vunpack.c.h.b16 %v611
    %v1471 = vunpack.c.l.b16 %v612
    %v1472 = vunpack.c.h.b16 %v612
    %v1473 = vunpack.c.l.b16 %v613
    %v1474 = vunpack.c.l.b16 %v614
    %v1475 = vunpack.c.h.b16 %v614
    %v1476 = vunpack.c.l.b16 %v615
    %v1477 = vunpack.c.h.b16 %v615
    %v1478 = vunpack.c.l.b16 %v616
    %v1479 = vunpack.c.h.b16 %v616
    %v1480 = vunpack.c.l.b16 %v617
    %v1481 = vunpack.c.l.b16 %v618
    %v1482 = vunpack.c.h.b16 %v618
    %v1483 = vunpack.c.l.b16 %v619
    %v1484 = vunpack.c.h.b16 %v619
    %v1485 = vunpack.c.l.b16 %v620
    %v1486 = vunpack.c.h.b16 %v620
    %v1487 = vunpack.c.l.b16 %v621
    %v1488 = vunpack.c.l.b16 %v622
    %v1489 = vunpack.c.h.b16 %v622
    %v1490 = vunpack.c.l.b16 %v623
    %v1491 = vunpack.c.h.b16 %v623
    %v1492 = vunpack.c.l.b16 %v624
    %v1493 = vunpack.c.h.b16 %v624
    %v1494 = vunpack.c.l.b16 %v625
    %v1495 = vunpack.c.l.b16 %v626
    %v1496 = vunpack.c.h.b16 %v626
    %v1497 = vunpack.c.l.b16 %v627
    %v1498 = vunpack.c.h.b16 %v627
    %v1499 = vunpack.c.l.b16 %v628
    %v1500 = vunpack.c.h.b16 %v628
    %v1501 = vunpack.c.l.b16 %v629
    %v1502 = vunpack.c.l.b16 %v630
    %v1503 = vunpack.c.h.b16 %v630
    %v1504 = vunpack.c.l.b16 %v631
    %v1505 = vunpack.c.h.b16 %v631
    %v1506 = vunpack.c.l.b16 %v632
    %v1507 = vunpack.c.h.b16 %v632
    %v1508 = vunpack.c.l.b16 %v633
    %v1509 = vunpack.c.l.b16 %v634
    %v1510 = vunpack.c.h.b16 %v634
    %v1511 = vunpack.c.l.b16 %v635
    %v1512 = vunpack.c.h.b16 %v635
    %v1513 = vunpack.c.l.b16 %v636
    %v1514 = vunpack.c.h.b16 %v636
    %v1515 = vunpack.c.l.b16 %v637
    %v1516 = vunpack.c.l.b16 %v638
    %v1517 = vunpack.c.h.b16 %v638
    %v1518 = vunpack.c.l.b16 %v639
    %v1519 = vunpack.c.h.b16 %v639
    %v1520 = vunpack.c.l.b16 %v640
    %v1521 = vunpack.c.h.b16 %v640
    %v1522 = vunpack.c.l.b16 %v641
    %v1523 = vunpack.c.l.b16 %v642
    %v1524 = vunpack.c.h.b16 %v642
    %v1525 = vunpack.c.l.b16 %v643
    %v1526 = vunpack.c.h.b16 %v643
    %v1527 = vunpack.c.l.b16 %v644
    %v1528 = vunpack.c.h.b16 %v644
    %v1529 = vunpack.c.l.b16 %v645
    %v1530 = vunpack.c.l.b16 %v646
    %v1531 = vunpack.c.h.b16 %v646
    %v1532 = vunpack.c.l.b16 %v647
    %v1533 = vunpack.c.h.b16 %v647
    %v1534 = vunpack.c.l.b16 %v648
    %v1535 = vunpack.c.h.b16 %v648
    %v1536 = vunpack.c.l.b16 %v649
    %v1537 = vunpack.c.l.b16 %v650
    %v1538 = vunpack.c.h.b16 %v650
    %v1539 = vunpack.c.l.b16 %v651
    %v1540 = vunpack.c.h.b16 %v651
    %v1541 = vunpack.c.l.b16 %v652
    %v1542 = vunpack.c.h.b16 %v652
    %v1543 = vunpack.c.l.b16 %v653
    %v1544 = vunpack.c.l.b16 %v654
    %v1545 = vunpack.c.h.b16 %v654
    %v1546 = vunpack.c.l.b16 %v655
    %v1547 = vunpack.c.h.b16 %v655
    %v1548 = vunpack.c.l.b16 %v656
    %v1549 = vunpack.c.h.b16 %v656
    %v1550 = vunpack.c.l.b16 %v657
    %v1551 = vunpack.c.l.b16 %v658
    %v1552 = vunpack.c.h.b16 %v658
    %v1553 = vunpack.c.l.b16 %v659
    %v1554 = vunpack.c.h.b16 %v659
    %v1555 = vunpack.c.l.b16 %v660
    %v1556 = vunpack.c.h.b16 %v660
    %v1557 = vunpack.c.l.b16 %v661
    %v1558 = vpack.c.b16 %v1005, %v998
    %v1559 = vpack.c.b16 %v1006, %v999
    %v1560 = vpack.c.b16 %v1007, %v1000
    %v1561 = vpack.c.b16 %v1008, %v1001
    %v1562 = vpack.c.b16 %v1009, %v1002
    %v1563 = vpack.c.b16 %v1010, %v1003
    %v1564 = vpack.c.b16 %v1011, %v1004
    %v1565 = vpack.c.b16 %v1019, %v1012
    %v1566 = vpack.c.b16 %v1020, %v1013
    %v1567 = vpack.c.b16 %v1021, %v1014
    %v1568 = vpack.c.b16 %v1022, %v1015
    %v1569 = vpack.c.b16 %v1023, %v1016
    %v1570 = vpack.c.b16 %v1024, %v1017
    %v1571 = vpack.c.b16 %v1025, %v1018
    %v1572 = vpack.c.b16 %v1033, %v1026
    %v1573 = vpack.c.b16 %v1034, %v1027
    %v1574 = vpack.c.b16 %v1035, %v1028
    %v1575 = vpack.c.b16 %v1036, %v1029
    %v1576 = vpack.c.b16 %v1037, %v1030
    %v1577 = vpack.c.b16 %v1038, %v1031
    %v1578 = vpack.c.b16 %v1039, %v1032
    %v1579 = vpack.c.b16 %v1047, %v1040
    %v1580 = vpack.c.b16 %v1048, %v1041
    %v1581 = vpack.c.b16 %v1049, %v1042
    %v1582 = vpack.c.b16 %v1050, %v1043
    %v1583 = vpack.c.b16 %v1051, %v1044
    %v1584 = vpack.c.b16 %v1052, %v1045
    %v1585 = vpack.c.b16 %v1053, %v1046
    %v1586 = vpack.c.b16 %v1061, %v1054
    %v1587 = vpack.c.b16 %v1062, %v1055
    %v1588 = vpack.c.b16 %v1063, %v1056
    %v1589 = vpack.c.b16 %v1064, %v1057
    %v1590 = vpack.c.b16 %v1065, %v1058
    %v1591 = vpack.c.b16 %v1066, %v1059
    %v1592 = vpack.c.b16 %v1067, %v1060
    %v1593 = vpack.c.b16 %v1075, %v1068
    %v1594 = vpack.c.b16 %v1076, %v1069
    %v1595 = vpack.c.b16 %v1077, %v1070
    %v1596 = vpack.c.b16 %v1078, %v1071
    %v1597 = vpack.c.b16 %v1079, %v1072
    %v1598 = vpack.c.b16 %v1080, %v1073
    %v1599 = vpack.c.b16 %v1081, %v1074
    %v1600 = vpack.c.b16 %v1089, %v1082
    %v1601 = vpack.c.b16 %v1090, %v1083
    %v1602 = vpack.c.b16 %v1091, %v1084
    %v1603 = vpack.c.b16 %v1092, %v1085
    %v1604 = vpack.c.b16 %v1093, %v1086
    %v1605 = vpack.c.b16 %v1094, %v1087
    %v1606 = vpack.c.b16 %v1095, %v1088
    %v1607 = vpack.c.b16 %v1103, %v1096
    %v1608 = vpack.c.b16 %v1104, %v1097
    %v1609 = vpack.c.b16 %v1105, %v1098
    %v1610 = vpack.c.b16 %v1106, %v1099
    %v1611 = vpack.c.b16 %v1107, %v1100
    %v1612 = vpack.c.b16 %v1108, %v1101
    %v1613 = vpack.c.b16 %v1109, %v1102
    %v1614 = vpack.c.b16 %v1117, %v1110
    %v1615 = vpack.c.b16 %v1118, %v1111
    %v1616 = vpack.c.b16 %v1119, %v1112
    %v1617 = vpack.c.b16 %v1120, %v1113
    %v1618 = vpack.c.b16 %v1121, %v1114
    %v1619 = vpack.c.b16 %v1122, %v1115
    %v1620 = vpack.c.b16 %v1123, %v1116
    %v1621 = vpack.c.b16 %v1131, %v1124
    %v1622 = vpack.c.b16 %v1132, %v1125
    %v1623 = vpack.c.b16 %v1133, %v1126
    %v1624 = vpack.c.b16 %v1134, %v1127
    %v1625 = vpack.c.b16 %v1135, %v1128
    %v1626 = vpack.c.b16 %v1136, %v1129
    %v1627 = vpack.c.b16 %v1137, %v1130
    %v1628 = vpack.c.b16 %v1145, %v1138
    %v1629 = vpack.c.b16 %v1146, %v1139
    %v1630 = vpack.c.b16 %v1147, %v1140
    %v1631 = vpack.c.b16 %v1148, %v1141
    %v1632 = vpack.c.b16 %v1149, %v1142
    %v1633 = vpack.c.b16 %v1150, %v1143
    %v1634 = vpack.c.b16 %v1151, %v1144
    %v1635 = vpack.c.b16 %v1159, %v1152
    %v1636 = vpack.c.b16 %v1160, %v1153
    %v1637 = vpack.c.b16 %v1161, %v1154
    %v1638 = vpack.c.b16 %v1162, %v1155
    %v1639 = vpack.c.b16 %v1163, %v1156
    %v1640 = vpack.c.b16 %v1164, %v1157
    %v1641 = vpack.c.b16 %v1165, %v1158
    %v1642 = vpack.c.b16 %v1173, %v1166
    %v1643 = vpack.c.b16 %v1174, %v1167
    %v1644 = vpack.c.b16 %v1175, %v1168
    %v1645 = vpack.c.b16 %v1176, %v1169
    %v1646 = vpack.c.b16 %v1177, %v1170
    %v1647 = vpack.c.b16 %v1178, %v1171
    %v1648 = vpack.c.b16 %v1179, %v1172
    %v1649 = vpack.c.b16 %v1187, %v1180
    %v1650 = vpack.c.b16 %v1188, %v1181
    %v1651 = vpack.c.b16 %v1189, %v1182
    %v1652 = vpack.c.b16 %v1190, %v1183
    %v1653 = vpack.c.b16 %v1191, %v1184
    %v1654 = vpack.c.b16 %v1192, %v1185
    %v1655 = vpack.c.b16 %v1193, %v1186
    %v1656 = vpack.c.b16 %v1201, %v1194
    %v1657 = vpack.c.b16 %v1202, %v1195
    %v1658 = vpack.c.b16 %v1203, %v1196
    %v1659 = vpack.c.b16 %v1204, %v1197
    %v1660 = vpack.c.b16 %v1205, %v1198
    %v1661 = vpack.c.b16 %v1206, %v1199
    %v1662 = vpack.c.b16 %v1207, %v1200
    %v1663 = vpack.c.b16 %v1215, %v1208
    %v1664 = vpack.c.b16 %v1216, %v1209
    %v1665 = vpack.c.b16 %v1217, %v1210
    %v1666 = vpack.c.b16 %v1218, %v1211
    %v1667 = vpack.c.b16 %v1219, %v1212
    %v1668 = vpack.c.b16 %v1220, %v1213
    %v1669 = vpack.c.b16 %v1221, %v1214
    %v1670 = vpack.c.b16 %v1229, %v1222
    %v1671 = vpack.c.b16 %v1230, %v1223
    %v1672 = vpack.c.b16 %v1231, %v1224
    %v1673 = vpack.c.b16 %v1232, %v1225
    %v1674 = vpack.c.b16 %v1233, %v1226
    %v1675 = vpack.c.b16 %v1234, %v1227
    %v1676 = vpack.c.b16 %v1235, %v1228
    %v1677 = vpack.c.b16 %v1243, %v1236
    %v1678 = vpack.c.b16 %v1244, %v1237
    %v1679 = vpack.c.b16 %v1245, %v1238
    %v1680 = vpack.c.b16 %v1246, %v1239
    %v1681 = vpack.c.b16 %v1247, %v1240
    %v1682 = vpack.c.b16 %v1248, %v1241
    %v1683 = vpack.c.b16 %v1249, %v1242
    %v1684 = vpack.c.b16 %v1257, %v1250
    %v1685 = vpack.c.b16 %v1258, %v1251
    %v1686 = vpack.c.b16 %v1259, %v1252
    %v1687 = vpack.c.b16 %v1260, %v1253
    %v1688 = vpack.c.b16 %v1261, %v1254
    %v1689 = vpack.c.b16 %v1262, %v1255
    %v1690 = vpack.c.b16 %v1263, %v1256
    %v1691 = vpack.c.b16 %v1271, %v1264
    %v1692 = vpack.c.b16 %v1272, %v1265
    %v1693 = vpack.c.b16 %v1273, %v1266
    %v1694 = vpack.c.b16 %v1274, %v1267
    %v1695 = vpack.c.b16 %v1275, %v1268
    %v1696 = vpack.c.b16 %v1276, %v1269
    %v1697 = vpack.c.b16 %v1277, %v1270
    %v1698 = vpack.c.b16 %v1285, %v1278
    %v1699 = vpack.c.b16 %v1286, %v1279
    %v1700 = vpack.c.b16 %v1287, %v1280
    %v1701 = vpack.c.b16 %v1288, %v1281
    %v1702 = vpack.c.b16 %v1289, %v1282
    %v1703 = vpack.c.b16 %v1290, %v1283
    %v1704 = vpack.c.b16 %v1291, %v1284
    %v1705 = vpack.c.b16 %v1299, %v1292
    %v1706 = vpack.c.b16 %v1300, %v1293
    %v1707 = vpack.c.b16 %v1301, %v1294
    %v1708 = vpack.c.b16 %v1302, %v1295
    %v1709 = vpack.c.b16 %v1303, %v1296
    %v1710 = vpack.c.b16 %v1304, %v1297
    %v1711 = vpack.c.b16 %v1305, %v1298
    %v1712 = vpack.c.b16 %v1313, %v1306
    %v1713 = vpack.c.b16 %v1314, %v1307
    %v1714 = vpack.c.b16 %v1315, %v1308
    %v1715 = vpack.c.b16 %v1316, %v1309
    %v1716 = vpack.c.b16 %v1317, %v1310
    %v1717 = vpack.c.b16 %v1318, %v1311
    %v1718 = vpack.c.b16 %v1319, %v1312
    %v1719 = vpack.c.b16 %v1327, %v1320
    %v1720 = vpack.c.b16 %v1328, %v1321
    %v1721 = vpack.c.b16 %v1329, %v1322
    %v1722 = vpack.c.b16 %v1330, %v1323
    %v1723 = vpack.c.b16 %v1331, %v1324
    %v1724 = vpack.c.b16 %v1332, %v1325
    %v1725 = vpack.c.b16 %v1333, %v1326
    %v1726 = vpack.c.b16 %v1341, %v1334
    %v1727 = vpack.c.b16 %v1342, %v1335
    %v1728 = vpack.c.b16 %v1343, %v1336
    %v1729 = vpack.c.b16 %v1344, %v1337
    %v1730 = vpack.c.b16 %v1345, %v1338
    %v1731 = vpack.c.b16 %v1346, %v1339
    %v1732 = vpack.c.b16 %v1347, %v1340
    %v1733 = vpack.c.b16 %v1355, %v1348
    %v1734 = vpack.c.b16 %v1356, %v1349
    %v1735 = vpack.c.b16 %v1357, %v1350
    %v1736 = vpack.c.b16 %v1358, %v1351
    %v1737 = vpack.c.b16 %v1359, %v1352
    %v1738 = vpack.c.b16 %v1360, %v1353
    %v1739 = vpack.c.b16 %v1361, %v1354
    %v1740 = vpack.c.b16 %v1369, %v1362
    %v1741 = vpack.c.b16 %v1370, %v1363
    %v1742 = vpack.c.b16 %v1371, %v1364
    %v1743 = vpack.c.b16 %v1372, %v1365
    %v1744 = vpack.c.b16 %v1373, %v1366
    %v1745 = vpack.c.b16 %v1374, %v1367
    %v1746 = vpack.c.b16 %v1375, %v1368
    %v1747 = vpack.c.b16 %v1383, %v1376
    %v1748 = vpack.c.b16 %v1384, %v1377
    %v1749 = vpack.c.b16 %v1385, %v1378
    %v1750 = vpack.c.b16 %v1386, %v1379
    %v1751 = vpack.c.b16 %v1387, %v1380
    %v1752 = vpack.c.b16 %v1388, %v1381
    %v1753 = vpack.c.b16 %v1389, %v1382
    %v1754 = vpack.c.b16 %v1397, %v1390
    %v1755 = vpack.c.b16 %v1398, %v1391
    %v1756 = vpack.c.b16 %v1399, %v1392
    %v1757 = vpack.c.b16 %v1400, %v1393
    %v1758 = vpack.c.b16 %v1401, %v1394
    %v1759 = vpack.c.b16 %v1402, %v1395
    %v1760 = vpack.c.b16 %v1403, %v1396
    %v1761 = vpack.c.b16 %v1411, %v1404
    %v1762 = vpack.c.b16 %v1412, %v1405
    %v1763 = vpack.c.b16 %v1413, %v1406
    %v1764 = vpack.c.b16 %v1414, %v1407
    %v1765 = vpack.c.b16 %v1415, %v1408
    %v1766 = vpack.c.b16 %v1416, %v1409
    %v1767 = vpack.c.b16 %v1417, %v1410
    %v1768 = vpack.c.b16 %v1425, %v1418
    %v1769 = vpack.c.b16 %v1426, %v1419
    %v1770 = vpack.c.b16 %v1427, %v1420
    %v1771 = vpack.c.b16 %v1428, %v1421
    %v1772 = vpack.c.b16 %v1429, %v1422
    %v1773 = vpack.c.b16 %v1430, %v1423
    %v1774 = vpack.c.b16 %v1431, %v1424
    %v1775 = vpack.c.b16 %v1439, %v1432
    %v1776 = vpack.c.b16 %v1440, %v1433
    %v1777 = vpack.c.b16 %v1441, %v1434
    %v1778 = vpack.c.b16 %v1442, %v1435
    %v1779 = vpack.c.b16 %v1443, %v1436
    %v1780 = vpack.c.b16 %v1444, %v1437
    %v1781 = vpack.c.b16 %v1445, %v1438
    %v1782 = vpack.c.b16 %v1453, %v1446
    %v1783 = vpack.c.b16 %v1454, %v1447
    %v1784 = vpack.c.b16 %v1455, %v1448
    %v1785 = vpack.c.b16 %v1456, %v1449
    %v1786 = vpack.c.b16 %v1457, %v1450
    %v1787 = vpack.c.b16 %v1458, %v1451
    %v1788 = vpack.c.b16 %v1459, %v1452
    %v1789 = vpack.c.b16 %v1467, %v1460
    %v1790 = vpack.c.b16 %v1468, %v1461
    %v1791 = vpack.c.b16 %v1469, %v1462
    %v1792 = vpack.c.b16 %v1470, %v1463
    %v1793 = vpack.c.b16 %v1471, %v1464
    %v1794 = vpack.c.b16 %v1472, %v1465
    %v1795 = vpack.c.b16 %v1473, %v1466
    %v1796 = vpack.c.b16 %v1481, %v1474
    %v1797 = vpack.c.b16 %v1482, %v1475
    %v1798 = vpack.c.b16 %v1483, %v1476
    %v1799 = vpack.c.b16 %v1484, %v1477
    %v1800 = vpack.c.b16 %v1485, %v1478
    %v1801 = vpack.c.b16 %v1486, %v1479
    %v1802 = vpack.c.b16 %v1487, %v1480
    %v1803 = vpack.c.b16 %v1495, %v1488
    %v1804 = vpack.c.b16 %v1496, %v1489
    %v1805 = vpack.c.b16 %v1497, %v1490
    %v1806 = vpack.c.b16 %v1498, %v1491
    %v1807 = vpack.c.b16 %v1499, %v1492
    %v1808 = vpack.c.b16 %v1500, %v1493
    %v1809 = vpack.c.b16 %v1501, %v1494
    %v1810 = vpack.c.b16 %v1509, %v1502
    %v1811 = vpack.c.b16 %v1510, %v1503
    %v1812 = vpack.c.b16 %v1511, %v1504
    %v1813 = vpack.c.b16 %v1512, %v1505
    %v1814 = vpack.c.b16 %v1513, %v1506
    %v1815 = vpack.c.b16 %v1514, %v1507
    %v1816 = vpack.c.b16 %v1515, %v1508
    %v1817 = vpack.c.b16 %v1523, %v1516
    %v1818 = vpack.c.b16 %v1524, %v1517
    %v1819 = vpack.c.b16 %v1525, %v1518
    %v1820 = vpack.c.b16 %v1526, %v1519
    %v1821 = vpack.c.b16 %v1527, %v1520
    %v1822 = vpack.c.b16 %v1528, %v1521
    %v1823 = vpack.c.b16 %v1529, %v1522
    %v1824 = vpack.c.b16 %v1537, %v1530
    %v1825 = vpack.c.b16 %v1538, %v1531
    %v1826 = vpack.c.b16 %v1539, %v1532
    %v1827 = vpack.c.b16 %v1540, %v1533
    %v1828 = vpack.c.b16 %v1541, %v1534
    %v1829 = vpack.c.b16 %v1542, %v1535
    %v1830 = vpack.c.b16 %v1543, %v1536
    %v1831 = vpack.c.b16 %v1551, %v1544
    %v1832 = vpack.c.b16 %v1552, %v1545
    %v1833 = vpack.c.b16 %v1553, %v1546
    %v1834 = vpack.c.b16 %v1554, %v1547
    %v1835 = vpack.c.b16 %v1555, %v1548
    %v1836 = vpack.c.b16 %v1556, %v1549
    %v1837 = vpack.c.b16 %v1557, %v1550
    %2118 = vmatpush.bf16.msra.mxu0 %v1607
    %2119 = vmatpush.bf16.msra.mxu0 %v1600
    %2120 = vmatpush.bf16.msra.mxu0 %v1593
    %2121 = vmatpush.bf16.msra.mxu0 %v1586
    %2122 = vmatpush.bf16.msra.mxu0 %v1579
    %2123 = vmatpush.bf16.msra.mxu0 %v1572
    %2124 = vmatpush.bf16.msra.mxu0 %v1565
    %2125 = vmatpush.bf16.msra.mxu0 %v1558
    %2126 = vmatmul.bf16.gmra.mxu0 %v337
    %v2127 = vpop.f32.mrf.mxu0
    %v2128 = vadd.f32 %v664, %v2127
    %v2129 = vpop.f32.mrf.mxu0
    %v2130 = vadd.f32 %v664, %v2129
    %2131 = vdwg.mxu0
    %2132 = vmatpush.bf16.msra.mxu0 %v1663
    %2133 = vmatpush.bf16.msra.mxu0 %v1656
    %2134 = vmatpush.bf16.msra.mxu0 %v1649
    %2135 = vmatpush.bf16.msra.mxu0 %v1642
    %2136 = vmatpush.bf16.msra.mxu0 %v1635
    %2137 = vmatpush.bf16.msra.mxu0 %v1628
    %2138 = vmatpush.bf16.msra.mxu0 %v1621
    %2139 = vmatpush.bf16.msra.mxu0 %v1614
    %2140 = vmatmul.bf16.gmra.mxu0 %v338
    %v2141 = vpop.f32.mrf.mxu0
    %v2142 = vadd.f32 %v2128, %v2141
    %v2143 = vpop.f32.mrf.mxu0
    %v2144 = vadd.f32 %v2130, %v2143
    %2145 = vdwg.mxu0
    %2146 = vmatpush.bf16.msra.mxu0 %v1719
    %2147 = vmatpush.bf16.msra.mxu0 %v1712
    %2148 = vmatpush.bf16.msra.mxu0 %v1705
    %2149 = vmatpush.bf16.msra.mxu0 %v1698
    %2150 = vmatpush.bf16.msra.mxu0 %v1691
    %2151 = vmatpush.bf16.msra.mxu0 %v1684
    %2152 = vmatpush.bf16.msra.mxu0 %v1677
    %2153 = vmatpush.bf16.msra.mxu0 %v1670
    %2154 = vmatmul.bf16.gmra.mxu0 %v339
    %v2155 = vpop.f32.mrf.mxu0
    %v2156 = vadd.f32 %v2142, %v2155
    %v2157 = vpop.f32.mrf.mxu0
    %v2158 = vadd.f32 %v2144, %v2157
    %2159 = vdwg.mxu0
    %2160 = vmatpush.bf16.msra.mxu0 %v1775
    %2161 = vmatpush.bf16.msra.mxu0 %v1768
    %2162 = vmatpush.bf16.msra.mxu0 %v1761
    %2163 = vmatpush.bf16.msra.mxu0 %v1754
    %2164 = vmatpush.bf16.msra.mxu0 %v1747
    %2165 = vmatpush.bf16.msra.mxu0 %v1740
    %2166 = vmatpush.bf16.msra.mxu0 %v1733
    %2167 = vmatpush.bf16.msra.mxu0 %v1726
    %2168 = vmatmul.bf16.gmra.mxu0 %v340
    %v2169 = vpop.f32.mrf.mxu0
    %v2170 = vadd.f32 %v2156, %v2169
    %v2171 = vpop.f32.mrf.mxu0
    %v2172 = vadd.f32 %v2158, %v2171
    %2173 = vdwg.mxu0
    %2174 = vmatpush.bf16.msra.mxu0 %v1831
    %2175 = vmatpush.bf16.msra.mxu0 %v1824
    %2176 = vmatpush.bf16.msra.mxu0 %v1817
    %2177 = vmatpush.bf16.msra.mxu0 %v1810
    %2178 = vmatpush.bf16.msra.mxu0 %v1803
    %2179 = vmatpush.bf16.msra.mxu0 %v1796
    %2180 = vmatpush.bf16.msra.mxu0 %v1789
    %2181 = vmatpush.bf16.msra.mxu0 %v1782
    %2182 = vmatmul.bf16.gmra.mxu0 %v341
    %v2183 = vpop.f32.mrf.mxu0
    %v2184 = vadd.f32 %v2170, %v2183
    %v2185 = vpop.f32.mrf.mxu0
    %v2186 = vadd.f32 %v2172, %v2185
    %2187 = vdwg.mxu0
    %2188 = vmatpush.bf16.msra.mxu0 %v1608
    %2189 = vmatpush.bf16.msra.mxu0 %v1601
    %2190 = vmatpush.bf16.msra.mxu0 %v1594
    %2191 = vmatpush.bf16.msra.mxu0 %v1587
    %2192 = vmatpush.bf16.msra.mxu0 %v1580
    %2193 = vmatpush.bf16.msra.mxu0 %v1573
    %2194 = vmatpush.bf16.msra.mxu0 %v1566
    %2195 = vmatpush.bf16.msra.mxu0 %v1559
    %2196 = vmatmul.bf16.gmra.mxu0 %v337
    %v2197 = vpop.f32.mrf.mxu0
    %v2198 = vadd.f32 %v665, %v2197
    %v2199 = vpop.f32.mrf.mxu0
    %v2200 = vadd.f32 %v665, %v2199
    %2201 = vdwg.mxu0
    %2202 = vmatpush.bf16.msra.mxu0 %v1664
    %2203 = vmatpush.bf16.msra.mxu0 %v1657
    %2204 = vmatpush.bf16.msra.mxu0 %v1650
    %2205 = vmatpush.bf16.msra.mxu0 %v1643
    %2206 = vmatpush.bf16.msra.mxu0 %v1636
    %2207 = vmatpush.bf16.msra.mxu0 %v1629
    %2208 = vmatpush.bf16.msra.mxu0 %v1622
    %2209 = vmatpush.bf16.msra.mxu0 %v1615
    %2210 = vmatmul.bf16.gmra.mxu0 %v338
    %v2211 = vpop.f32.mrf.mxu0
    %v2212 = vadd.f32 %v2198, %v2211
    %v2213 = vpop.f32.mrf.mxu0
    %v2214 = vadd.f32 %v2200, %v2213
    %2215 = vdwg.mxu0
    %2216 = vmatpush.bf16.msra.mxu0 %v1720
    %2217 = vmatpush.bf16.msra.mxu0 %v1713
    %2218 = vmatpush.bf16.msra.mxu0 %v1706
    %2219 = vmatpush.bf16.msra.mxu0 %v1699
    %2220 = vmatpush.bf16.msra.mxu0 %v1692
    %2221 = vmatpush.bf16.msra.mxu0 %v1685
    %2222 = vmatpush.bf16.msra.mxu0 %v1678
    %2223 = vmatpush.bf16.msra.mxu0 %v1671
    %2224 = vmatmul.bf16.gmra.mxu0 %v339
    %v2225 = vpop.f32.mrf.mxu0
    %v2226 = vadd.f32 %v2212, %v2225
    %v2227 = vpop.f32.mrf.mxu0
    %v2228 = vadd.f32 %v2214, %v2227
    %2229 = vdwg.mxu0
    %2230 = vmatpush.bf16.msra.mxu0 %v1776
    %2231 = vmatpush.bf16.msra.mxu0 %v1769
    %2232 = vmatpush.bf16.msra.mxu0 %v1762
    %2233 = vmatpush.bf16.msra.mxu0 %v1755
    %2234 = vmatpush.bf16.msra.mxu0 %v1748
    %2235 = vmatpush.bf16.msra.mxu0 %v1741
    %2236 = vmatpush.bf16.msra.mxu0 %v1734
    %2237 = vmatpush.bf16.msra.mxu0 %v1727
    %2238 = vmatmul.bf16.gmra.mxu0 %v340
    %v2239 = vpop.f32.mrf.mxu0
    %v2240 = vadd.f32 %v2226, %v2239
    %v2241 = vpop.f32.mrf.mxu0
    %v2242 = vadd.f32 %v2228, %v2241
    %2243 = vdwg.mxu0
    %2244 = vmatpush.bf16.msra.mxu0 %v1832
    %2245 = vmatpush.bf16.msra.mxu0 %v1825
    %2246 = vmatpush.bf16.msra.mxu0 %v1818
    %2247 = vmatpush.bf16.msra.mxu0 %v1811
    %2248 = vmatpush.bf16.msra.mxu0 %v1804
    %2249 = vmatpush.bf16.msra.mxu0 %v1797
    %2250 = vmatpush.bf16.msra.mxu0 %v1790
    %2251 = vmatpush.bf16.msra.mxu0 %v1783
    %2252 = vmatmul.bf16.gmra.mxu0 %v341
    %v2253 = vpop.f32.mrf.mxu0
    %v2254 = vadd.f32 %v2240, %v2253
    %v2255 = vpop.f32.mrf.mxu0
    %v2256 = vadd.f32 %v2242, %v2255
    %2257 = vdwg.mxu0
    %2258 = vmatpush.bf16.msra.mxu0 %v1609
    %2259 = vmatpush.bf16.msra.mxu0 %v1602
    %2260 = vmatpush.bf16.msra.mxu0 %v1595
    %2261 = vmatpush.bf16.msra.mxu0 %v1588
    %2262 = vmatpush.bf16.msra.mxu0 %v1581
    %2263 = vmatpush.bf16.msra.mxu0 %v1574
    %2264 = vmatpush.bf16.msra.mxu0 %v1567
    %2265 = vmatpush.bf16.msra.mxu0 %v1560
    %2266 = vmatmul.bf16.gmra.mxu0 %v337
    %v2267 = vpop.f32.mrf.mxu0
    %v2268 = vadd.f32 %v666, %v2267
    %v2269 = vpop.f32.mrf.mxu0
    %v2270 = vadd.f32 %v666, %v2269
    %2271 = vdwg.mxu0
    %2272 = vmatpush.bf16.msra.mxu0 %v1665
    %2273 = vmatpush.bf16.msra.mxu0 %v1658
    %2274 = vmatpush.bf16.msra.mxu0 %v1651
    %2275 = vmatpush.bf16.msra.mxu0 %v1644
    %2276 = vmatpush.bf16.msra.mxu0 %v1637
    %2277 = vmatpush.bf16.msra.mxu0 %v1630
    %2278 = vmatpush.bf16.msra.mxu0 %v1623
    %2279 = vmatpush.bf16.msra.mxu0 %v1616
    %2280 = vmatmul.bf16.gmra.mxu0 %v338
    %v2281 = vpop.f32.mrf.mxu0
    %v2282 = vadd.f32 %v2268, %v2281
    %v2283 = vpop.f32.mrf.mxu0
    %v2284 = vadd.f32 %v2270, %v2283
    %2285 = vdwg.mxu0
    %2286 = vmatpush.bf16.msra.mxu0 %v1721
    %2287 = vmatpush.bf16.msra.mxu0 %v1714
    %2288 = vmatpush.bf16.msra.mxu0 %v1707
    %2289 = vmatpush.bf16.msra.mxu0 %v1700
    %2290 = vmatpush.bf16.msra.mxu0 %v1693
    %2291 = vmatpush.bf16.msra.mxu0 %v1686
    %2292 = vmatpush.bf16.msra.mxu0 %v1679
    %2293 = vmatpush.bf16.msra.mxu0 %v1672
    %2294 = vmatmul.bf16.gmra.mxu0 %v339
    %v2295 = vpop.f32.mrf.mxu0
    %v2296 = vadd.f32 %v2282, %v2295
    %v2297 = vpop.f32.mrf.mxu0
    %v2298 = vadd.f32 %v2284, %v2297
    %2299 = vdwg.mxu0
    %2300 = vmatpush.bf16.msra.mxu0 %v1777
    %2301 = vmatpush.bf16.msra.mxu0 %v1770
    %2302 = vmatpush.bf16.msra.mxu0 %v1763
    %2303 = vmatpush.bf16.msra.mxu0 %v1756
    %2304 = vmatpush.bf16.msra.mxu0 %v1749
    %2305 = vmatpush.bf16.msra.mxu0 %v1742
    %2306 = vmatpush.bf16.msra.mxu0 %v1735
    %2307 = vmatpush.bf16.msra.mxu0 %v1728
    %2308 = vmatmul.bf16.gmra.mxu0 %v340
    %v2309 = vpop.f32.mrf.mxu0
    %v2310 = vadd.f32 %v2296, %v2309
    %v2311 = vpop.f32.mrf.mxu0
    %v2312 = vadd.f32 %v2298, %v2311
    %2313 = vdwg.mxu0
    %2314 = vmatpush.bf16.msra.mxu0 %v1833
    %2315 = vmatpush.bf16.msra.mxu0 %v1826
    %2316 = vmatpush.bf16.msra.mxu0 %v1819
    %2317 = vmatpush.bf16.msra.mxu0 %v1812
    %2318 = vmatpush.bf16.msra.mxu0 %v1805
    %2319 = vmatpush.bf16.msra.mxu0 %v1798
    %2320 = vmatpush.bf16.msra.mxu0 %v1791
    %2321 = vmatpush.bf16.msra.mxu0 %v1784
    %2322 = vmatmul.bf16.gmra.mxu0 %v341
    %v2323 = vpop.f32.mrf.mxu0
    %v2324 = vadd.f32 %v2310, %v2323
    %v2325 = vpop.f32.mrf.mxu0
    %v2326 = vadd.f32 %v2312, %v2325
    %2327 = vdwg.mxu0
    %2328 = vmatpush.bf16.msra.mxu0 %v1610
    %2329 = vmatpush.bf16.msra.mxu0 %v1603
    %2330 = vmatpush.bf16.msra.mxu0 %v1596
    %2331 = vmatpush.bf16.msra.mxu0 %v1589
    %2332 = vmatpush.bf16.msra.mxu0 %v1582
    %2333 = vmatpush.bf16.msra.mxu0 %v1575
    %2334 = vmatpush.bf16.msra.mxu0 %v1568
    %2335 = vmatpush.bf16.msra.mxu0 %v1561
    %2336 = vmatmul.bf16.gmra.mxu0 %v337
    %v2337 = vpop.f32.mrf.mxu0
    %v2338 = vadd.f32 %v667, %v2337
    %v2339 = vpop.f32.mrf.mxu0
    %v2340 = vadd.f32 %v667, %v2339
    %2341 = vdwg.mxu0
    %2342 = vmatpush.bf16.msra.mxu0 %v1666
    %2343 = vmatpush.bf16.msra.mxu0 %v1659
    %2344 = vmatpush.bf16.msra.mxu0 %v1652
    %2345 = vmatpush.bf16.msra.mxu0 %v1645
    %2346 = vmatpush.bf16.msra.mxu0 %v1638
    %2347 = vmatpush.bf16.msra.mxu0 %v1631
    %2348 = vmatpush.bf16.msra.mxu0 %v1624
    %2349 = vmatpush.bf16.msra.mxu0 %v1617
    %2350 = vmatmul.bf16.gmra.mxu0 %v338
    %v2351 = vpop.f32.mrf.mxu0
    %v2352 = vadd.f32 %v2338, %v2351
    %v2353 = vpop.f32.mrf.mxu0
    %v2354 = vadd.f32 %v2340, %v2353
    %2355 = vdwg.mxu0
    %2356 = vmatpush.bf16.msra.mxu0 %v1722
    %2357 = vmatpush.bf16.msra.mxu0 %v1715
    %2358 = vmatpush.bf16.msra.mxu0 %v1708
    %2359 = vmatpush.bf16.msra.mxu0 %v1701
    %2360 = vmatpush.bf16.msra.mxu0 %v1694
    %2361 = vmatpush.bf16.msra.mxu0 %v1687
    %2362 = vmatpush.bf16.msra.mxu0 %v1680
    %2363 = vmatpush.bf16.msra.mxu0 %v1673
    %2364 = vmatmul.bf16.gmra.mxu0 %v339
    %v2365 = vpop.f32.mrf.mxu0
    %v2366 = vadd.f32 %v2352, %v2365
    %v2367 = vpop.f32.mrf.mxu0
    %v2368 = vadd.f32 %v2354, %v2367
    %2369 = vdwg.mxu0
    %2370 = vmatpush.bf16.msra.mxu0 %v1778
    %2371 = vmatpush.bf16.msra.mxu0 %v1771
    %2372 = vmatpush.bf16.msra.mxu0 %v1764
    %2373 = vmatpush.bf16.msra.mxu0 %v1757
    %2374 = vmatpush.bf16.msra.mxu0 %v1750
    %2375 = vmatpush.bf16.msra.mxu0 %v1743
    %2376 = vmatpush.bf16.msra.mxu0 %v1736
    %2377 = vmatpush.bf16.msra.mxu0 %v1729
    %2378 = vmatmul.bf16.gmra.mxu0 %v340
    %v2379 = vpop.f32.mrf.mxu0
    %v2380 = vadd.f32 %v2366, %v2379
    %v2381 = vpop.f32.mrf.mxu0
    %v2382 = vadd.f32 %v2368, %v2381
    %2383 = vdwg.mxu0
    %2384 = vmatpush.bf16.msra.mxu0 %v1834
    %2385 = vmatpush.bf16.msra.mxu0 %v1827
    %2386 = vmatpush.bf16.msra.mxu0 %v1820
    %2387 = vmatpush.bf16.msra.mxu0 %v1813
    %2388 = vmatpush.bf16.msra.mxu0 %v1806
    %2389 = vmatpush.bf16.msra.mxu0 %v1799
    %2390 = vmatpush.bf16.msra.mxu0 %v1792
    %2391 = vmatpush.bf16.msra.mxu0 %v1785
    %2392 = vmatmul.bf16.gmra.mxu0 %v341
    %v2393 = vpop.f32.mrf.mxu0
    %v2394 = vadd.f32 %v2380, %v2393
    %v2395 = vpop.f32.mrf.mxu0
    %v2396 = vadd.f32 %v2382, %v2395
    %2397 = vdwg.mxu0
    %2398 = vmatpush.bf16.msra.mxu0 %v1611
    %2399 = vmatpush.bf16.msra.mxu0 %v1604
    %2400 = vmatpush.bf16.msra.mxu0 %v1597
    %2401 = vmatpush.bf16.msra.mxu0 %v1590
    %2402 = vmatpush.bf16.msra.mxu0 %v1583
    %2403 = vmatpush.bf16.msra.mxu0 %v1576
    %2404 = vmatpush.bf16.msra.mxu0 %v1569
    %2405 = vmatpush.bf16.msra.mxu0 %v1562
    %2406 = vmatmul.bf16.gmra.mxu0 %v337
    %v2407 = vpop.f32.mrf.mxu0
    %v2408 = vadd.f32 %v668, %v2407
    %v2409 = vpop.f32.mrf.mxu0
    %v2410 = vadd.f32 %v668, %v2409
    %2411 = vdwg.mxu0
    %2412 = vmatpush.bf16.msra.mxu0 %v1667
    %2413 = vmatpush.bf16.msra.mxu0 %v1660
    %2414 = vmatpush.bf16.msra.mxu0 %v1653
    %2415 = vmatpush.bf16.msra.mxu0 %v1646
    %2416 = vmatpush.bf16.msra.mxu0 %v1639
    %2417 = vmatpush.bf16.msra.mxu0 %v1632
    %2418 = vmatpush.bf16.msra.mxu0 %v1625
    %2419 = vmatpush.bf16.msra.mxu0 %v1618
    %2420 = vmatmul.bf16.gmra.mxu0 %v338
    %v2421 = vpop.f32.mrf.mxu0
    %v2422 = vadd.f32 %v2408, %v2421
    %v2423 = vpop.f32.mrf.mxu0
    %v2424 = vadd.f32 %v2410, %v2423
    %2425 = vdwg.mxu0
    %2426 = vmatpush.bf16.msra.mxu0 %v1723
    %2427 = vmatpush.bf16.msra.mxu0 %v1716
    %2428 = vmatpush.bf16.msra.mxu0 %v1709
    %2429 = vmatpush.bf16.msra.mxu0 %v1702
    %2430 = vmatpush.bf16.msra.mxu0 %v1695
    %2431 = vmatpush.bf16.msra.mxu0 %v1688
    %2432 = vmatpush.bf16.msra.mxu0 %v1681
    %2433 = vmatpush.bf16.msra.mxu0 %v1674
    %2434 = vmatmul.bf16.gmra.mxu0 %v339
    %v2435 = vpop.f32.mrf.mxu0
    %v2436 = vadd.f32 %v2422, %v2435
    %v2437 = vpop.f32.mrf.mxu0
    %v2438 = vadd.f32 %v2424, %v2437
    %2439 = vdwg.mxu0
    %2440 = vmatpush.bf16.msra.mxu0 %v1779
    %2441 = vmatpush.bf16.msra.mxu0 %v1772
    %2442 = vmatpush.bf16.msra.mxu0 %v1765
    %2443 = vmatpush.bf16.msra.mxu0 %v1758
    %2444 = vmatpush.bf16.msra.mxu0 %v1751
    %2445 = vmatpush.bf16.msra.mxu0 %v1744
    %2446 = vmatpush.bf16.msra.mxu0 %v1737
    %2447 = vmatpush.bf16.msra.mxu0 %v1730
    %2448 = vmatmul.bf16.gmra.mxu0 %v340
    %v2449 = vpop.f32.mrf.mxu0
    %v2450 = vadd.f32 %v2436, %v2449
    %v2451 = vpop.f32.mrf.mxu0
    %v2452 = vadd.f32 %v2438, %v2451
    %2453 = vdwg.mxu0
    %2454 = vmatpush.bf16.msra.mxu0 %v1835
    %2455 = vmatpush.bf16.msra.mxu0 %v1828
    %2456 = vmatpush.bf16.msra.mxu0 %v1821
    %2457 = vmatpush.bf16.msra.mxu0 %v1814
    %2458 = vmatpush.bf16.msra.mxu0 %v1807
    %2459 = vmatpush.bf16.msra.mxu0 %v1800
    %2460 = vmatpush.bf16.msra.mxu0 %v1793
    %2461 = vmatpush.bf16.msra.mxu0 %v1786
    %2462 = vmatmul.bf16.gmra.mxu0 %v341
    %v2463 = vpop.f32.mrf.mxu0
    %v2464 = vadd.f32 %v2450, %v2463
    %v2465 = vpop.f32.mrf.mxu0
    %v2466 = vadd.f32 %v2452, %v2465
    %2467 = vdwg.mxu0
    %2468 = vmatpush.bf16.msra.mxu0 %v1612
    %2469 = vmatpush.bf16.msra.mxu0 %v1605
    %2470 = vmatpush.bf16.msra.mxu0 %v1598
    %2471 = vmatpush.bf16.msra.mxu0 %v1591
    %2472 = vmatpush.bf16.msra.mxu0 %v1584
    %2473 = vmatpush.bf16.msra.mxu0 %v1577
    %2474 = vmatpush.bf16.msra.mxu0 %v1570
    %2475 = vmatpush.bf16.msra.mxu0 %v1563
    %2476 = vmatmul.bf16.gmra.mxu0 %v337
    %v2477 = vpop.f32.mrf.mxu0
    %v2478 = vadd.f32 %v669, %v2477
    %v2479 = vpop.f32.mrf.mxu0
    %v2480 = vadd.f32 %v669, %v2479
    %2481 = vdwg.mxu0
    %2482 = vmatpush.bf16.msra.mxu0 %v1668
    %2483 = vmatpush.bf16.msra.mxu0 %v1661
    %2484 = vmatpush.bf16.msra.mxu0 %v1654
    %2485 = vmatpush.bf16.msra.mxu0 %v1647
    %2486 = vmatpush.bf16.msra.mxu0 %v1640
    %2487 = vmatpush.bf16.msra.mxu0 %v1633
    %2488 = vmatpush.bf16.msra.mxu0 %v1626
    %2489 = vmatpush.bf16.msra.mxu0 %v1619
    %2490 = vmatmul.bf16.gmra.mxu0 %v338
    %v2491 = vpop.f32.mrf.mxu0
    %v2492 = vadd.f32 %v2478, %v2491
    %v2493 = vpop.f32.mrf.mxu0
    %v2494 = vadd.f32 %v2480, %v2493
    %2495 = vdwg.mxu0
    %2496 = vmatpush.bf16.msra.mxu0 %v1724
    %2497 = vmatpush.bf16.msra.mxu0 %v1717
    %2498 = vmatpush.bf16.msra.mxu0 %v1710
    %2499 = vmatpush.bf16.msra.mxu0 %v1703
    %2500 = vmatpush.bf16.msra.mxu0 %v1696
    %2501 = vmatpush.bf16.msra.mxu0 %v1689
    %2502 = vmatpush.bf16.msra.mxu0 %v1682
    %2503 = vmatpush.bf16.msra.mxu0 %v1675
    %2504 = vmatmul.bf16.gmra.mxu0 %v339
    %v2505 = vpop.f32.mrf.mxu0
    %v2506 = vadd.f32 %v2492, %v2505
    %v2507 = vpop.f32.mrf.mxu0
    %v2508 = vadd.f32 %v2494, %v2507
    %2509 = vdwg.mxu0
    %2510 = vmatpush.bf16.msra.mxu0 %v1780
    %2511 = vmatpush.bf16.msra.mxu0 %v1773
    %2512 = vmatpush.bf16.msra.mxu0 %v1766
    %2513 = vmatpush.bf16.msra.mxu0 %v1759
    %2514 = vmatpush.bf16.msra.mxu0 %v1752
    %2515 = vmatpush.bf16.msra.mxu0 %v1745
    %2516 = vmatpush.bf16.msra.mxu0 %v1738
    %2517 = vmatpush.bf16.msra.mxu0 %v1731
    %2518 = vmatmul.bf16.gmra.mxu0 %v340
    %v2519 = vpop.f32.mrf.mxu0
    %v2520 = vadd.f32 %v2506, %v2519
    %v2521 = vpop.f32.mrf.mxu0
    %v2522 = vadd.f32 %v2508, %v2521
    %2523 = vdwg.mxu0
    %2524 = vmatpush.bf16.msra.mxu0 %v1836
    %2525 = vmatpush.bf16.msra.mxu0 %v1829
    %2526 = vmatpush.bf16.msra.mxu0 %v1822
    %2527 = vmatpush.bf16.msra.mxu0 %v1815
    %2528 = vmatpush.bf16.msra.mxu0 %v1808
    %2529 = vmatpush.bf16.msra.mxu0 %v1801
    %2530 = vmatpush.bf16.msra.mxu0 %v1794
    %2531 = vmatpush.bf16.msra.mxu0 %v1787
    %2532 = vmatmul.bf16.gmra.mxu0 %v341
    %v2533 = vpop.f32.mrf.mxu0
    %v2534 = vadd.f32 %v2520, %v2533
    %v2535 = vpop.f32.mrf.mxu0
    %v2536 = vadd.f32 %v2522, %v2535
    %2537 = vdwg.mxu0
    %2538 = vmatpush.bf16.msra.mxu0 %v1613
    %2539 = vmatpush.bf16.msra.mxu0 %v1606
    %2540 = vmatpush.bf16.msra.mxu0 %v1599
    %2541 = vmatpush.bf16.msra.mxu0 %v1592
    %2542 = vmatpush.bf16.msra.mxu0 %v1585
    %2543 = vmatpush.bf16.msra.mxu0 %v1578
    %2544 = vmatpush.bf16.msra.mxu0 %v1571
    %2545 = vmatpush.bf16.msra.mxu0 %v1564
    %2546 = vmatmul.bf16.gmra.mxu0 %v337
    %v2547 = vpop.f32.mrf.mxu0
    %v2548 = vadd.f32 %v670, %v2547
    %v2549 = vpop.f32.mrf.mxu0
    %v2550 = vadd.f32 %v670, %v2549
    %2551 = vdwg.mxu0
    %2552 = vmatpush.bf16.msra.mxu0 %v1669
    %2553 = vmatpush.bf16.msra.mxu0 %v1662
    %2554 = vmatpush.bf16.msra.mxu0 %v1655
    %2555 = vmatpush.bf16.msra.mxu0 %v1648
    %2556 = vmatpush.bf16.msra.mxu0 %v1641
    %2557 = vmatpush.bf16.msra.mxu0 %v1634
    %2558 = vmatpush.bf16.msra.mxu0 %v1627
    %2559 = vmatpush.bf16.msra.mxu0 %v1620
    %2560 = vmatmul.bf16.gmra.mxu0 %v338
    %v2561 = vpop.f32.mrf.mxu0
    %v2562 = vadd.f32 %v2548, %v2561
    %v2563 = vpop.f32.mrf.mxu0
    %v2564 = vadd.f32 %v2550, %v2563
    %2565 = vdwg.mxu0
    %2566 = vmatpush.bf16.msra.mxu0 %v1725
    %2567 = vmatpush.bf16.msra.mxu0 %v1718
    %2568 = vmatpush.bf16.msra.mxu0 %v1711
    %2569 = vmatpush.bf16.msra.mxu0 %v1704
    %2570 = vmatpush.bf16.msra.mxu0 %v1697
    %2571 = vmatpush.bf16.msra.mxu0 %v1690
    %2572 = vmatpush.bf16.msra.mxu0 %v1683
    %2573 = vmatpush.bf16.msra.mxu0 %v1676
    %2574 = vmatmul.bf16.gmra.mxu0 %v339
    %v2575 = vpop.f32.mrf.mxu0
    %v2576 = vadd.f32 %v2562, %v2575
    %v2577 = vpop.f32.mrf.mxu0
    %v2578 = vadd.f32 %v2564, %v2577
    %2579 = vdwg.mxu0
    %2580 = vmatpush.bf16.msra.mxu0 %v1781
    %2581 = vmatpush.bf16.msra.mxu0 %v1774
    %2582 = vmatpush.bf16.msra.mxu0 %v1767
    %2583 = vmatpush.bf16.msra.mxu0 %v1760
    %2584 = vmatpush.bf16.msra.mxu0 %v1753
    %2585 = vmatpush.bf16.msra.mxu0 %v1746
    %2586 = vmatpush.bf16.msra.mxu0 %v1739
    %2587 = vmatpush.bf16.msra.mxu0 %v1732
    %2588 = vmatmul.bf16.gmra.mxu0 %v340
    %v2589 = vpop.f32.mrf.mxu0
    %v2590 = vadd.f32 %v2576, %v2589
    %v2591 = vpop.f32.mrf.mxu0
    %v2592 = vadd.f32 %v2578, %v2591
    %2593 = vdwg.mxu0
    %2594 = vmatpush.bf16.msra.mxu0 %v1837
    %2595 = vmatpush.bf16.msra.mxu0 %v1830
    %2596 = vmatpush.bf16.msra.mxu0 %v1823
    %2597 = vmatpush.bf16.msra.mxu0 %v1816
    %2598 = vmatpush.bf16.msra.mxu0 %v1809
    %2599 = vmatpush.bf16.msra.mxu0 %v1802
    %2600 = vmatpush.bf16.msra.mxu0 %v1795
    %2601 = vmatpush.bf16.msra.mxu0 %v1788
    %2602 = vmatmul.bf16.gmra.mxu0 %v341
    %v2603 = vpop.f32.mrf.mxu0
    %v2604 = vadd.f32 %v2590, %v2603
    %v2605 = vpop.f32.mrf.mxu0
    %v2606 = vadd.f32 %v2592, %v2605
    %2607 = vdwg.mxu0
    %2608 = vst [vmem:[#allocation10] sm:$0xff] %v2184
    %2609 = vst [vmem:[#allocation10 + $0x8] sm:$0xff] %v2254
    %2610 = vst [vmem:[#allocation10 + $0x10] sm:$0xff] %v2324
    %2611 = vst [vmem:[#allocation10 + $0x18] sm:$0xff] %v2394
    %2612 = vst [vmem:[#allocation10 + $0x20] sm:$0xff] %v2464
    %2613 = vst [vmem:[#allocation10 + $0x28] sm:$0xff] %v2534
    %2614 = vst [vmem:[#allocation10 + $0x30] sm:$0xff] %v2604
    %2615 = vst [vmem:[#allocation10 + $0x38] sm:$0xff] %v2186
    %2616 = vst [vmem:[#allocation10 + $0x40] sm:$0xff] %v2256
    %2617 = vst [vmem:[#allocation10 + $0x48] sm:$0xff] %v2326
    %2618 = vst [vmem:[#allocation10 + $0x50] sm:$0xff] %v2396
    %2619 = vst [vmem:[#allocation10 + $0x58] sm:$0xff] %v2466
    %2620 = vst [vmem:[#allocation10 + $0x60] sm:$0xff] %v2536
    %2621 = vst [vmem:[#allocation10 + $0x68] sm:$0xff] %v2606
    // Predicated region
    $region34: #{tpu_custom_call.1} parent=1 // pred_check
      _
    $region35: #{tpu_custom_call.1} parent=1 // pred_check_branch
      %2623 = sbr.rel (0) target = $region37
    $region36: #{tpu_custom_call.1} parent=1 // pred_region
      %2625 = vsyncadd [#allocation4], 0
      %s2626 = sshll.u32 [#allocation10], 4
      %s2627 = int_to_ptr.vmem [resolvable:$true] %s2626
      %s2628 = sshll.u32 %s4, 4
      %s2629 = int_to_ptr.hbm [resolvable:$true] %s2628
      %2634 = dma.vmem_to_hbm [thread:$0]  %s2627, 1792, %s2629, [#allocation4], 896, 896, 56
    $region37: #{tpu_custom_call.1} parent=1 // pred_fallthru
      _
    // Predicated region
    $region38: #{tpu_custom_call.1} parent=1 // pred_check
      _
    $region39: #{tpu_custom_call.1} parent=1 // pred_check_branch
      %2636 = sbr.rel (0) target = $region41
    $region40: #{tpu_custom_call.1} parent=1 // pred_region
      %2638 = dma.done [#allocation4], 1792
    $region41: #{tpu_custom_call.1} parent=1 // pred_fallthru
      _
    %2639 = vsyncpa [#allocation3], 1
    %2640 = vsyncpa [#allocation6], 1
    %2641 = vsyncpa [#allocation9], 1
    %2642 = vsyncpa [#allocation4], 1

</llo_original>
